<compile_context>
chip_gen: v5e
topology: v5e:2x2
jax: 0.10.0
libtpu: 0.0.40
codegen_flags: <defaults>
</compile_context>

<pallas_src>
import jax
import jax.numpy as jnp
from jax.experimental import pallas as pl
from jax.experimental.pallas import tpu as pltpu

C, H, W = 128, 28, 28
K = C * H * W            # 100352 = in_features
N = 128                  # out_features


def _select_config(device_kind: str):
    """Per-generation (tk, num_splits, vmem_limit) tuned for weight streaming."""
    kind = device_kind.lower()
    if "v7" in kind:
        # 2 TCs, 64 MiB VMEM each: 2 K-steps per split, both cores stream half.
        return dict(tk=25088, num_splits=2, vmem_limit=48 << 20)
    if "v6" in kind or "v5p" in kind:
        # 128 MiB VMEM: large tile, per-step overhead negligible.
        return dict(tk=25088, num_splits=1, vmem_limit=40 << 20)
    if "v5" in kind:
        # v5e: 16 MiB scoped default must be raised explicitly.
        return dict(tk=12544, num_splits=1, vmem_limit=32 << 20)
    # Unknown / older generation: small tile, stay inside default scoped VMEM.
    return dict(tk=6272, num_splits=1, vmem_limit=None)


def prepare_weight(weight_nk, dtype=jnp.float32):
    """One-time parameter prep (outside the hot path).

    Takes the torch-layout (N, K) weight, returns a (K, N) array in the
    requested streaming dtype.  Use jnp.bfloat16 to halve HBM traffic on this
    memory-bound op (accumulation in the kernel stays f32); use jnp.float32
    to preserve the reference numerics exactly.
    """
    return jnp.asarray(weight_nk).T.astype(dtype)


def fc_kernel(x_ref, w_ref, b_ref, o_ref):
    """One K-tile of out = x @ W_kn (+ bias); accumulates into the resident output.

    x_ref: (B, TK) f32    w_ref: (TK, N) f32/bf16    b_ref: (1, N) f32
    o_ref: (B, N) f32 resident accumulator.
    grid = (num_splits, K_tiles_per_split); axis 1 is the K reduction.
    """
    k = pl.program_id(1)

    @pl.when(k == 0)
    def _():
        o_ref[...] = jnp.zeros_like(o_ref)

    # Cast the tiny x tile to the weight streaming dtype (no-op for f32) so the
    # MXU sees matched operand dtypes; accumulate in f32.
    x_tile = x_ref[...].astype(w_ref.dtype)
    o_ref[...] += jnp.dot(x_tile, w_ref[...], preferred_element_type=jnp.float32)

    # Add the bias exactly once: split 0, last K step.
    @pl.when((k == pl.num_programs(1) - 1) & (pl.program_id(0) == 0))
    def _():
        o_ref[...] += b_ref[...]


def fully_connected(x, weight_kn, bias, *, tk=None, num_splits=None, vmem_limit=None):
    """x: (B, C, H, W) or (B, K); weight_kn: (K, N) from prepare_weight; bias: (N,)."""
    xb = x.reshape(-1, K)                          # same semantics as torch .view(-1, K)
    B = xb.shape[0]
    assert weight_kn.shape == (K, N), weight_kn.shape

    cfg = _select_config(jax.devices()[0].device_kind)
    tk = cfg["tk"] if tk is None else tk
    num_splits = cfg["num_splits"] if num_splits is None else num_splits
    vmem_limit = cfg["vmem_limit"] if vmem_limit is None else vmem_limit

    assert K % tk == 0, (K, tk)
    n_k = K // tk
    assert n_k % num_splits == 0, (n_k, num_splits)
    spc = n_k // num_splits                        # K tiles per split

    b2 = bias.reshape(1, N).astype(jnp.float32)

    in_specs = [
        pl.BlockSpec((B, tk), lambda c, k: (0, c * spc + k)),     # x tile (~100 KiB)
        pl.BlockSpec((tk, N), lambda c, k: (c * spc + k, 0)),     # weight tile (K, N)
        pl.BlockSpec((1, N), lambda c, k: (0, 0)),                # bias (resident)
    ]

    if num_splits == 1:
        out_shape = jax.ShapeDtypeStruct((B, N), jnp.float32)
        out_specs = pl.BlockSpec((B, N), lambda c, k: (0, 0))
    else:
        out_shape = jax.ShapeDtypeStruct((num_splits, B, N), jnp.float32)
        out_specs = pl.BlockSpec((None, B, N), lambda c, k: (c, 0, 0))

    flops = 2 * B * K * N
    bytes_accessed = (
        weight_kn.size * weight_kn.dtype.itemsize
        + xb.size * xb.dtype.itemsize
        + b2.size * 4
        + num_splits * B * N * 4
    )

    out = pl.pallas_call(
        fc_kernel,
        out_shape=out_shape,
        grid_spec=pltpu.PrefetchScalarGridSpec(
            num_scalar_prefetch=0,
            grid=(num_splits, spc),
            in_specs=in_specs,
            out_specs=out_specs,
        ),
        compiler_params=pltpu.CompilerParams(
            dimension_semantics=("parallel", "arbitrary"),
            vmem_limit_bytes=vmem_limit,
        ),
        cost_estimate=pl.CostEstimate(
            flops=flops, transcendentals=0, bytes_accessed=bytes_accessed,
        ),
    )(xb, weight_kn, b2)

    if num_splits > 1:
        # Tiny (num_splits, B, N) reduction of per-core partials; bias was
        # already folded into the split-0 slab inside the kernel.
        out = out.sum(axis=0)
    return out


if __name__ == "__main__":
    key = jax.random.PRNGKey(0)
    kx, kw, kb = jax.random.split(key, 3)

    B = 2
    x = jax.random.normal(kx, (B, C, H, W), dtype=jnp.float32)

    # Deterministic parameter init mimicking nn.Linear default: U(-1/sqrt(K), 1/sqrt(K))
    bound = 1.0 / jnp.sqrt(jnp.float32(K))
    weight = jax.random.uniform(kw, (N, K), minval=-bound, maxval=bound,
                                dtype=jnp.float32)
    bias = jax.random.uniform(kb, (N,), minval=-bound, maxval=bound,
                              dtype=jnp.float32)

    # High-precision plain-JAX reference.
    ref = (jnp.dot(x.reshape(-1, K), weight.T, precision=jax.lax.Precision.HIGHEST)
           + bias)

    # 1) Reference-semantics path: f32 weight streaming.
    w_f32 = prepare_weight(weight, jnp.float32)
    out = jax.block_until_ready(fully_connected(x, w_f32, bias))
    assert out.shape == (B, N)
    assert jnp.allclose(out, ref, atol=2e-2, rtol=2e-2)

    # 2) Bandwidth-optimized path: bf16 weight streaming, f32 accumulate
    #    (halves HBM traffic on this memory-bound op; numerics differ slightly).
    w_bf16 = prepare_weight(weight, jnp.bfloat16)
    out_bf16 = jax.block_until_ready(fully_connected(x, w_bf16, bias))
    assert out_bf16.shape == (B, N)
    assert jnp.allclose(out_bf16, ref, atol=5e-2, rtol=5e-2)

    print("KERNEL_OK")
</pallas_src>

<mosaic_0001>
module attributes {stable_mosaic.version = 11 : i64} {
  func.func @fc_kernel(%arg0: i32, %arg1: i32, %arg2: memref<2x6272xf32, #tpu.memory_space<vmem>>, %arg3: memref<6272x128xf32, #tpu.memory_space<vmem>>, %arg4: memref<1x128xf32, #tpu.memory_space<vmem>>, %arg5: memref<2x128xf32, #tpu.memory_space<vmem>>) attributes {dimension_semantics = [#tpu.dimension_semantics<parallel>, #tpu.dimension_semantics<arbitrary>], iteration_bounds = array<i64: 1, 16>, scalar_prefetch = 0 : i64, scratch_operands = 0 : i64, tpu.core_type = #tpu.core_type<tc>, window_params = [{transform_indices = @transform_0, window_bounds = array<i64: 2, 6272>}, {transform_indices = @transform_1, window_bounds = array<i64: 6272, 128>}, {pipeline_mode = #tpu.pipeline_mode<synchronous>, transform_indices = @transform_2, window_bounds = array<i64: 1, 128>}, {pipeline_mode = #tpu.pipeline_mode<synchronous>, transform_indices = @transform_3, window_bounds = array<i64: 2, 128>}]} {
    %c0_i32 = arith.constant 0 : i32
    %0 = arith.cmpi eq, %arg1, %c0_i32 : i32
    %1 = arith.extui %0 : i1 to i32
    %c0_i32_0 = arith.constant 0 : i32
    %2 = arith.cmpi ne, %1, %c0_i32_0 : i32
    scf.if %2 {
      %cst_10 = arith.constant 0.000000e+00 : f32
      %14 = vector.broadcast %cst_10 : f32 to vector<2x128xf32>
      %c0_11 = arith.constant 0 : index
      %c0_12 = arith.constant 0 : index
      %15 = vector.load %arg5[%c0_11, %c0_12] : memref<2x128xf32, #tpu.memory_space<vmem>>, vector<2x128xf32>
      tpu.vector_store %arg5[%c0_11, %c0_12], %14 {strides = array<i32>} : memref<2x128xf32, #tpu.memory_space<vmem>>, vector<2x128xf32>,
    } else {
    }
    %c0 = arith.constant 0 : index
    %c0_1 = arith.constant 0 : index
    %3 = vector.load %arg2[%c0, %c0_1] : memref<2x6272xf32, #tpu.memory_space<vmem>>, vector<2x6272xf32>
    %c0_2 = arith.constant 0 : index
    %c0_3 = arith.constant 0 : index
    %4 = vector.load %arg5[%c0_2, %c0_3] : memref<2x128xf32, #tpu.memory_space<vmem>>, vector<2x128xf32>
    %c0_4 = arith.constant 0 : index
    %c0_5 = arith.constant 0 : index
    %5 = vector.load %arg3[%c0_4, %c0_5] : memref<6272x128xf32, #tpu.memory_space<vmem>>, vector<6272x128xf32>
    %cst = arith.constant dense<0.000000e+00> : vector<2x128xf32>
    %6 = tpu.matmul %3, %5, %cst {dimension_numbers = #tpu.dot_dimension_numbers<[1], [0], [0], [1], [0, 0, 1, 1], [], []>} : vector<2x6272xf32>, vector<6272x128xf32>, vector<2x128xf32> -> vector<2x128xf32>
    %7 = arith.addf %4, %6 : vector<2x128xf32>
    %c0_6 = arith.constant 0 : index
    %c0_7 = arith.constant 0 : index
    %8 = vector.load %arg5[%c0_6, %c0_7] : memref<2x128xf32, #tpu.memory_space<vmem>>, vector<2x128xf32>
    tpu.vector_store %arg5[%c0_6, %c0_7], %7 {strides = array<i32>} : memref<2x128xf32, #tpu.memory_space<vmem>>, vector<2x128xf32>,
    %c15_i32 = arith.constant 15 : i32
    %9 = arith.cmpi eq, %arg1, %c15_i32 : i32
    %c0_i32_8 = arith.constant 0 : i32
    %10 = arith.cmpi eq, %arg0, %c0_i32_8 : i32
    %11 = arith.andi %9, %10 : i1
    %12 = arith.extui %11 : i1 to i32
    %c0_i32_9 = arith.constant 0 : i32
    %13 = arith.cmpi ne, %12, %c0_i32_9 : i32
    scf.if %13 {
      %c0_10 = arith.constant 0 : index
      %c0_11 = arith.constant 0 : index
      %14 = vector.load %arg5[%c0_10, %c0_11] : memref<2x128xf32, #tpu.memory_space<vmem>>, vector<2x128xf32>
      %c0_12 = arith.constant 0 : index
      %c0_13 = arith.constant 0 : index
      %15 = vector.load %arg4[%c0_12, %c0_13] : memref<1x128xf32, #tpu.memory_space<vmem>>, vector<1x128xf32>
      %16 = vector.broadcast %15 : vector<1x128xf32> to vector<2x128xf32>
      %17 = arith.addf %14, %16 : vector<2x128xf32>
      %c0_14 = arith.constant 0 : index
      %c0_15 = arith.constant 0 : index
      %18 = vector.load %arg5[%c0_14, %c0_15] : memref<2x128xf32, #tpu.memory_space<vmem>>, vector<2x128xf32>
      tpu.vector_store %arg5[%c0_14, %c0_15], %17 {strides = array<i32>} : memref<2x128xf32, #tpu.memory_space<vmem>>, vector<2x128xf32>,
    } else {
    }
    return
  }
  func.func @transform_0(%arg0: i32, %arg1: i32) -> (i32, i32) {
    %c16_i32 = arith.constant 16 : i32
    %0 = arith.muli %arg0, %c16_i32 : i32
    %1 = arith.addi %0, %arg1 : i32
    %c0_i32 = arith.constant 0 : i32
    %c0_i32_0 = arith.constant 0 : i32
    return %c0_i32, %1 : i32, i32
  }
  func.func @transform_1(%arg0: i32, %arg1: i32) -> (i32, i32) {
    %c16_i32 = arith.constant 16 : i32
    %0 = arith.muli %arg0, %c16_i32 : i32
    %1 = arith.addi %0, %arg1 : i32
    %c0_i32 = arith.constant 0 : i32
    %c0_i32_0 = arith.constant 0 : i32
    return %1, %c0_i32 : i32, i32
  }
  func.func @transform_2(%arg0: i32, %arg1: i32) -> (i32, i32) {
    %c0_i32 = arith.constant 0 : i32
    %c0_i32_0 = arith.constant 0 : i32
    %c0_i32_1 = arith.constant 0 : i32
    return %c0_i32, %c0_i32_0 : i32, i32
  }
  func.func @transform_3(%arg0: i32, %arg1: i32) -> (i32, i32) {
    %c0_i32 = arith.constant 0 : i32
    %c0_i32_0 = arith.constant 0 : i32
    %c0_i32_1 = arith.constant 0 : i32
    return %c0_i32, %c0_i32_0 : i32, i32
  }
}

</mosaic_0001>

<llo_original>
// kernel: tpu_custom_call.1
$region0: #{tpu_custom_call.1}
  #allocation0 [shape = 'u32[]', space=smem, size = 0x4, offset = 0x4, fixed_abs, tag = 'smem constant byte address 0x4 - core index']
  #allocation1 [shape = 'u32[72,128]{1,0:T(1,128)}', space=vmem, size = 0x9000, scoped, tag = 'internal scratch']
  %s0 = inlined_call_operand.hbm [shape: f32[2,100352], index: 0, kind: input, shape index: {}]
  %s1 = inlined_call_operand.hbm [shape: f32[100352,128], index: 1, kind: input, shape index: {}]
  %s2 = inlined_call_operand.hbm [shape: f32[1,128], index: 2, kind: input, shape index: {}]
  %s3 = inlined_call_operand.hbm [shape: f32[2,128], index: 3, kind: output, shape index: {}]
  %s4 = sld [smem:[#allocation0]]
  $region65: #{tpu_custom_call.1} parent=0
    _
  %s6 = ssub.s32 1, %s4
  %s7 = scalar_select 0, %s6, %s4
  $region1: #{tpu_custom_call.1} parent=0
    #allocation2 [shape = 'u8[100352]{0}', space=vmem, size = 0x18800, scoped, tag = 'input window, operand 0']
    #allocation3 [shape = 's32[2]{0}', space=sflag, size = 0x8, scoped, tag = 'scoped memory for tpu_custom_call.1']
    #allocation4 [shape = 's32[2]{0}', space=sflag, size = 0x8, scoped, tag = 'scoped memory for tpu_custom_call.1']
    #allocation5 [shape = 'u8[6422528]{0}', space=vmem, size = 0x620000, scoped, tag = 'input window, operand 1']
    #allocation6 [shape = 's32[2]{0}', space=sflag, size = 0x8, scoped, tag = 'scoped memory for tpu_custom_call.1']
    #allocation7 [shape = 'u8[512]{0}', space=vmem, size = 0x400, scoped, tag = 'input window, operand 2, single buffered']
    #allocation8 [shape = 'u8[1024]{0}', space=vmem, size = 0x400, scoped, tag = 'output window, operand 0, single buffered']
    %8 = vsyncpa [#allocation3], 0
    %s9 = scalar_lea.sflag [#allocation3], 1
    %10 = vsyncpa %s9, 0
    %11 = vsyncpa [#allocation6], 0
    %s12 = scalar_lea.sflag [#allocation6], 1
    %13 = vsyncpa %s12, 0
    %14 = vsyncpa [#allocation4], 0
    loop: start=0, step=1, limit=18
    $region2: #{tpu_custom_call.1} parent=1 // loop_pre_header
      _
    $region3: #{tpu_custom_call.1} parent=1 // loop_header
      %s16 = sphi 0, %s20
      %p17 = scmp.ge.s32.totalorder %s16, 18
      %s23 = sphi 0, %s35
      %s24 = sphi 0, %s31
      %s25 = sphi 0, %s23
      %s26 = sphi 0, %s24
      %s27 = sphi 0, %s25
      %s28 = sphi 0, %s26
      %s42 = sphi 0, %s44
      %s45 = sphi 0, %s42
      %s46 = sphi 0, %s45
      %s62 = sphi 0, %s46
      %s72 = sphi 0, %s74
      %s75 = sphi 0, %s72
      %s76 = sphi 0, %s75
      %s92 = sphi 0, %s76
      %s96 = sphi 0, %s96
      %s98 = sphi 0, %s96
      %s99 = sphi 0, %s98
      %s113 = sphi 0, %s99
      %s117 = sphi 0, %s117
      %s119 = sphi 0, %s117
      %s120 = sphi 0, %s119
      %s134 = sphi 0, %s120
    $region4: #{tpu_custom_call.1} parent=1 // loop_header_branch
      %19 = sbr.rel (%p17) target = $region8
    $region5: #{tpu_custom_call.1} parent=1 // loop_body
      %s21 = ssub.s32 %s16, 1
      %s22 = ssub.s32 %s16, 2
      %s29 = sadd.s32 1, %s24
      %p30 = scmp.ge.s32.totalorder %s29, 16
      %s31 = scalar_select %p30, 0, %s29
      %s32 = sadd.s32 1, %s23
      %s33 = scalar_select %p30, %s32, %s23
      %p34 = scmp.ge.s32.totalorder %s33, 1
      %s35 = scalar_select %p34, 0, %s33
      %s36 = smul.u32 %s23, 16
      %s37 = sadd.s32 %s36, %s24
      %s38 = smul.u32 %s35, 16
      %s39 = sadd.s32 %s38, %s31
      %s40 = ssub.s32 %s37, %s39
      %p41 = scmp.eq.s32.totalorder %s40, 0
      %s43 = sadd.s32 %s42, 1
      %s44 = scalar_select %p41, %s42, %s43
      %p47 = pneg %p41
      %p48 = scmp.eq.s32.totalorder %s16, 15
      %p49 = por %p47, %p48
      %p50 = scmp.ne.s32.totalorder %s42, %s45
      %p51 = scmp.eq.s32.totalorder %s16, 0
      %p52 = por %p50, %p51
      %p53 = scmp.ne.s32.totalorder %s42, %s45
      %p54 = scmp.eq.s32.totalorder %s21, 15
      %p55 = por %p53, %p54
      %p56 = scmp.ne.s32.totalorder %s45, %s46
      %p57 = scmp.eq.s32.totalorder %s21, 0
      %p58 = por %p56, %p57
      %p59 = scmp.ne.s32.totalorder %s45, %s46
      %p60 = scmp.eq.s32.totalorder %s22, 15
      %p61 = por %p59, %p60
      %p63 = scmp.ne.s32.totalorder %s46, %s62
      %p64 = scmp.eq.s32.totalorder %s22, 0
      %p65 = por %p63, %p64
      %s66 = smul.u32 %s23, 16
      %s67 = sadd.s32 %s66, %s24
      %s68 = smul.u32 %s35, 16
      %s69 = sadd.s32 %s68, %s31
      %s70 = ssub.s32 %s67, %s69
      %p71 = scmp.eq.s32.totalorder %s70, 0
      %s73 = sadd.s32 %s72, 1
      %s74 = scalar_select %p71, %s72, %s73
      %p77 = pneg %p71
      %p78 = scmp.eq.s32.totalorder %s16, 15
      %p79 = por %p77, %p78
      %p80 = scmp.ne.s32.totalorder %s72, %s75
      %p81 = scmp.eq.s32.totalorder %s16, 0
      %p82 = por %p80, %p81
      %p83 = scmp.ne.s32.totalorder %s72, %s75
      %p84 = scmp.eq.s32.totalorder %s21, 15
      %p85 = por %p83, %p84
      %p86 = scmp.ne.s32.totalorder %s75, %s76
      %p87 = scmp.eq.s32.totalorder %s21, 0
      %p88 = por %p86, %p87
      %p89 = scmp.ne.s32.totalorder %s75, %s76
      %p90 = scmp.eq.s32.totalorder %s22, 15
      %p91 = por %p89, %p90
      %p93 = scmp.ne.s32.totalorder %s76, %s92
      %p94 = scmp.eq.s32.totalorder %s22, 0
      %p95 = por %p93, %p94
      %s97 = sadd.s32 %s96, 1
      %p100 = scmp.eq.s32.totalorder %s16, 15
      %p101 = scmp.ne.s32.totalorder %s96, %s98
      %p102 = scmp.eq.s32.totalorder %s16, 0
      %p103 = por %p101, %p102
      %p104 = scmp.ne.s32.totalorder %s96, %s98
      %p105 = scmp.eq.s32.totalorder %s21, 15
      %p106 = por %p104, %p105
      %p107 = scmp.ne.s32.totalorder %s98, %s99
      %p108 = scmp.eq.s32.totalorder %s21, 0
      %p109 = por %p107, %p108
      %p110 = scmp.ne.s32.totalorder %s98, %s99
      %p111 = scmp.eq.s32.totalorder %s22, 15
      %p112 = por %p110, %p111
      %p114 = scmp.ne.s32.totalorder %s99, %s113
      %p115 = scmp.eq.s32.totalorder %s22, 0
      %p116 = por %p114, %p115
      %s118 = sadd.s32 %s117, 1
      %p121 = scmp.eq.s32.totalorder %s16, 15
      %p122 = scmp.ne.s32.totalorder %s117, %s119
      %p123 = scmp.eq.s32.totalorder %s16, 0
      %p124 = por %p122, %p123
      %p125 = scmp.ne.s32.totalorder %s117, %s119
      %p126 = scmp.eq.s32.totalorder %s21, 15
      %p127 = por %p125, %p126
      %p128 = scmp.ne.s32.totalorder %s119, %s120
      %p129 = scmp.eq.s32.totalorder %s21, 0
      %p130 = por %p128, %p129
      %p131 = scmp.ne.s32.totalorder %s119, %s120
      %p132 = scmp.eq.s32.totalorder %s22, 15
      %p133 = por %p131, %p132
      %p135 = scmp.ne.s32.totalorder %s120, %s134
      %p136 = scmp.eq.s32.totalorder %s22, 0
      %p137 = por %p135, %p136
      %p138 = scmp.le.s32.totalorder 1, %s16
      %p139 = scmp.lt.s32.totalorder %s16, 17
      %p140 = pnand %p138, %p139
      %p141 = pneg %p140
      // Predicated region
      $region9: #{tpu_custom_call.1} parent=5 // pred_check
        _
      $region10: #{tpu_custom_call.1} parent=5 // pred_check_branch
        %143 = sbr.rel (%p140) target = $region12
      $region11: #{tpu_custom_call.1} parent=5 // pred_region
        %s144 = ssub.s32 %s16, 1
        // Predicated region
        $region13: #{tpu_custom_call.1} parent=11 // pred_check
          %p145 = pneg %p109
        $region14: #{tpu_custom_call.1} parent=11 // pred_check_branch
          %147 = sbr.rel (%p145) target = $region16
        $region15: #{tpu_custom_call.1} parent=11 // pred_region
          %149 = vsyncadd [#allocation6], 0
          %s151 = sshll.u32 %s2, 4
          %s152 = int_to_ptr.hbm [resolvable:$true] %s151
          %s153 = sshll.u32 [#allocation7], 4
          %s154 = int_to_ptr.vmem [resolvable:$true] %s153
          %156 = dma.hbm_to_vmem [thread:$0]  %s152, 16, %s154, [#allocation6]
        $region16: #{tpu_custom_call.1} parent=11 // pred_fallthru
          _
      $region12: #{tpu_custom_call.1} parent=5 // pred_fallthru
        _
      %p157 = scmp.lt.s32.totalorder %s16, 16
      // Predicated region
      $region17: #{tpu_custom_call.1} parent=5 // pred_check
        %p158 = pneg %p157
      $region18: #{tpu_custom_call.1} parent=5 // pred_check_branch
        %160 = sbr.rel (%p158) target = $region20
      $region19: #{tpu_custom_call.1} parent=5 // pred_region
        // Predicated region
        $region21: #{tpu_custom_call.1} parent=19 // pred_check
          %p161 = pneg %p52
        $region22: #{tpu_custom_call.1} parent=19 // pred_check_branch
          %163 = sbr.rel (%p161) target = $region24
        $region23: #{tpu_custom_call.1} parent=19 // pred_region
          %s164 = sand.u32 %s42, 1
          %s165 = scalar_lea.sflag [#allocation3], %s164
          %s166 = sand.u32 %s42, 1
          %s167 = smul.addr %s166, 98
          %s168 = scalar_lea.vmem [#allocation2], %s167
          %s169 = smul.u32 %s23, 16
          %s170 = sadd.s32 %s169, %s24
          %s171 = smul.u32 49, %s170
          %173 = vsyncadd %s165, 0
          %s174 = smul.addr %s171, 2
          %s175 = scalar_lea.hbm %s0, %s174
          %s177 = sshll.u32 %s175, 4
          %s178 = int_to_ptr.hbm [resolvable:$true] %s177
          %s179 = sshll.u32 %s168, 4
          %s180 = int_to_ptr.vmem [resolvable:$true] %s179
          %182 = dma.hbm_to_vmem [thread:$0]  %s178, 1568, %s180, %s165
        $region24: #{tpu_custom_call.1} parent=19 // pred_fallthru
          _
        // Predicated region
        $region25: #{tpu_custom_call.1} parent=19 // pred_check
          %p183 = pneg %p82
        $region26: #{tpu_custom_call.1} parent=19 // pred_check_branch
          %185 = sbr.rel (%p183) target = $region28
        $region27: #{tpu_custom_call.1} parent=19 // pred_region
          %s186 = sand.u32 %s16, 1
          %s187 = scalar_lea.sflag [#allocation6], %s186
          %s188 = sand.u32 %s72, 1
          %s189 = smul.addr %s188, 6272
          %s190 = scalar_lea.vmem [#allocation5], %s189
          %s191 = smul.u32 %s23, 16
          %s192 = sadd.s32 %s191, %s24
          %s193 = smul.u32 784, %s192
          %195 = vsyncadd %s187, 0
          %s196 = smul.addr %s193, 8
          %s197 = scalar_lea.hbm %s1, %s196
          %s198 = sshll.u32 %s197, 4
          %s199 = int_to_ptr.hbm [resolvable:$true] %s198
          %s200 = sshll.u32 %s190, 4
          %s201 = int_to_ptr.vmem [resolvable:$true] %s200
          %206 = dma.hbm_to_vmem [thread:$0]  %s199, 100352, %s201, %s187, 128, 128, 8
        $region28: #{tpu_custom_call.1} parent=19 // pred_fallthru
          _
      $region20: #{tpu_custom_call.1} parent=5 // pred_fallthru
        _
      %p207 = scmp.le.s32.totalorder 1, %s16
      %p208 = scmp.lt.s32.totalorder %s16, 17
      %p209 = pnand %p207, %p208
      %p210 = pneg %p209
      // Predicated region
      $region29: #{tpu_custom_call.1} parent=5 // pred_check
        _
      $region30: #{tpu_custom_call.1} parent=5 // pred_check_branch
        %212 = sbr.rel (%p209) target = $region32
      $region31: #{tpu_custom_call.1} parent=5 // pred_region
        %s213 = ssub.s32 %s16, 1
        %s214 = sand.u32 %s45, 1
        %s215 = scalar_lea.sflag [#allocation3], %s214
        %s216 = sand.u32 %s45, 1
        %s217 = smul.addr %s216, 98
        %s218 = scalar_lea.vmem [#allocation2], %s217
        // Predicated region
        $region33: #{tpu_custom_call.1} parent=31 // pred_check
          %p219 = pneg %p58
        $region34: #{tpu_custom_call.1} parent=31 // pred_check_branch
          %221 = sbr.rel (%p219) target = $region36
        $region35: #{tpu_custom_call.1} parent=31 // pred_region
          %223 = dma.done %s215, 1568
        $region36: #{tpu_custom_call.1} parent=31 // pred_fallthru
          _
        %s224 = sand.u32 %s21, 1
        %s225 = scalar_lea.sflag [#allocation6], %s224
        %s226 = sand.u32 %s75, 1
        %s227 = smul.addr %s226, 6272
        %s228 = scalar_lea.vmem [#allocation5], %s227
        // Predicated region
        $region37: #{tpu_custom_call.1} parent=31 // pred_check
          %p229 = pneg %p88
        $region38: #{tpu_custom_call.1} parent=31 // pred_check_branch
          %231 = sbr.rel (%p229) target = $region40
        $region39: #{tpu_custom_call.1} parent=31 // pred_region
          %233 = dma.done %s225, 100352
        $region40: #{tpu_custom_call.1} parent=31 // pred_fallthru
          _
        // Predicated region
        $region41: #{tpu_custom_call.1} parent=31 // pred_check
          %p234 = pneg %p109
        $region42: #{tpu_custom_call.1} parent=31 // pred_check_branch
          %236 = sbr.rel (%p234) target = $region44
        $region43: #{tpu_custom_call.1} parent=31 // pred_region
          %238 = dma.done [#allocation6], 16
        $region44: #{tpu_custom_call.1} parent=31 // pred_fallthru
          _
        %s239 = sand.u32 %s45, 1
        %s240 = scalar_lea.sflag [#allocation3], %s239
        %s241 = sand.u32 %s45, 1
        %s242 = smul.addr %s241, 98
        %s243 = scalar_lea.vmem [#allocation2], %s242
        %p244 = pneg %p58
        %p245 = pneg %p55
        %s246 = sand.u32 %s21, 1
        %s247 = scalar_lea.sflag [#allocation6], %s246
        %s248 = sand.u32 %s75, 1
        %s249 = smul.addr %s248, 6272
        %s250 = scalar_lea.vmem [#allocation5], %s249
        %p251 = pneg %p88
        %p252 = pneg %p85
        %p253 = pneg %p109
        %p254 = pneg %p106
        %p255 = pneg %p130
        %p256 = pneg %p127
        %s257 = smul.u32 %s25, 16
        %s258 = sadd.s32 %s257, %s26
        %s259 = smul.u32 49, %s258
        %s260 = smul.u32 %s25, 16
        %s261 = sadd.s32 %s260, %s26
        %s262 = smul.u32 784, %s261
        %p263 = scmp.eq.s32.totalorder %s26, 0
        // Predicated region
        $region45: #{tpu_custom_call.1} parent=31 // pred_check
          %p264 = pneg %p263
        $region46: #{tpu_custom_call.1} parent=31 // pred_check_branch
          %266 = sbr.rel (%p264) target = $region48
        $region47: #{tpu_custom_call.1} parent=31 // pred_region
          %267 = vst [vmem:[#allocation8] sm:$0x3] 0.0
        $region48: #{tpu_custom_call.1} parent=31 // pred_fallthru
          _
        %v268 = vld [vmem:[%s218] sm:$0xff]
        %v269 = vld [vmem:[%s218 + $0x8] sm:$0xff]
        %v270 = vld [vmem:[%s218 + $0x10] sm:$0xff]
        %v271 = vld [vmem:[%s218 + $0x18] sm:$0xff]
        %v272 = vld [vmem:[%s218 + $0x20] sm:$0xff]
        %v273 = vld [vmem:[%s218 + $0x28] sm:$0xff]
        %v274 = vld [vmem:[%s218 + $0x30] sm:$0xff]
        %v275 = vld [vmem:[%s218 + $0x38] sm:$0xff]
        %v276 = vld [vmem:[%s218 + $0x40] sm:$0xff]
        %v277 = vld [vmem:[%s218 + $0x48] sm:$0xff]
        %v278 = vld [vmem:[%s218 + $0x50] sm:$0xff]
        %v279 = vld [vmem:[%s218 + $0x58] sm:$0xff]
        %v280 = vld [vmem:[%s218 + $0x60] sm:$0x3]
        %v281 = vld [vmem:[#allocation8] sm:$0x3]
        %v282 = vld [vmem:[%s228] sm:$0xff]
        %v283 = vld [vmem:[%s228 + $0x8] sm:$0xff]
        %v284 = vld [vmem:[%s228 + $0x10] sm:$0xff]
        %v285 = vld [vmem:[%s228 + $0x18] sm:$0xff]
        %v286 = vld [vmem:[%s228 + $0x20] sm:$0xff]
        %v287 = vld [vmem:[%s228 + $0x28] sm:$0xff]
        %v288 = vld [vmem:[%s228 + $0x30] sm:$0xff]
        %v289 = vld [vmem:[%s228 + $0x38] sm:$0xff]
        %v290 = vld [vmem:[%s228 + $0x40] sm:$0xff]
        %v291 = vld [vmem:[%s228 + $0x48] sm:$0xff]
        %v292 = vld [vmem:[%s228 + $0x50] sm:$0xff]
        %v293 = vld [vmem:[%s228 + $0x58] sm:$0xff]
        %v294 = vld [vmem:[%s228 + $0x60] sm:$0xff]
        %v295 = vld [vmem:[%s228 + $0x68] sm:$0xff]
        %v296 = vld [vmem:[%s228 + $0x70] sm:$0xff]
        %v297 = vld [vmem:[%s228 + $0x78] sm:$0xff]
        %v298 = vld [vmem:[%s228 + $0x80] sm:$0xff]
        %v299 = vld [vmem:[%s228 + $0x88] sm:$0xff]
        %v300 = vld [vmem:[%s228 + $0x90] sm:$0xff]
        %v301 = vld [vmem:[%s228 + $0x98] sm:$0xff]
        %v302 = vld [vmem:[%s228 + $0xa0] sm:$0xff]
        %v303 = vld [vmem:[%s228 + $0xa8] sm:$0xff]
        %v304 = vld [vmem:[%s228 + $0xb0] sm:$0xff]
        %v305 = vld [vmem:[%s228 + $0xb8] sm:$0xff]
        %v306 = vld [vmem:[%s228 + $0xc0] sm:$0xff]
        %v307 = vld [vmem:[%s228 + $0xc8] sm:$0xff]
        %v308 = vld [vmem:[%s228 + $0xd0] sm:$0xff]
        %v309 = vld [vmem:[%s228 + $0xd8] sm:$0xff]
        %v310 = vld [vmem:[%s228 + $0xe0] sm:$0xff]
        %v311 = vld [vmem:[%s228 + $0xe8] sm:$0xff]
        %v312 = vld [vmem:[%s228 + $0xf0] sm:$0xff]
        %v313 = vld [vmem:[%s228 + $0xf8] sm:$0xff]
        %v314 = vld [vmem:[%s228 + $0x100] sm:$0xff]
        %v315 = vld [vmem:[%s228 + $0x108] sm:$0xff]
        %v316 = vld [vmem:[%s228 + $0x110] sm:$0xff]
        %v317 = vld [vmem:[%s228 + $0x118] sm:$0xff]
        %v318 = vld [vmem:[%s228 + $0x120] sm:$0xff]
        %v319 = vld [vmem:[%s228 + $0x128] sm:$0xff]
        %v320 = vld [vmem:[%s228 + $0x130] sm:$0xff]
        %v321 = vld [vmem:[%s228 + $0x138] sm:$0xff]
        %v322 = vld [vmem:[%s228 + $0x140] sm:$0xff]
        %v323 = vld [vmem:[%s228 + $0x148] sm:$0xff]
        %v324 = vld [vmem:[%s228 + $0x150] sm:$0xff]
        %v325 = vld [vmem:[%s228 + $0x158] sm:$0xff]
        %v326 = vld [vmem:[%s228 + $0x160] sm:$0xff]
        %v327 = vld [vmem:[%s228 + $0x168] sm:$0xff]
        %v328 = vld [vmem:[%s228 + $0x170] sm:$0xff]
        %v329 = vld [vmem:[%s228 + $0x178] sm:$0xff]
        %v330 = vld [vmem:[%s228 + $0x180] sm:$0xff]
        %v331 = vld [vmem:[%s228 + $0x188] sm:$0xff]
        %v332 = vld [vmem:[%s228 + $0x190] sm:$0xff]
        %v333 = vld [vmem:[%s228 + $0x198] sm:$0xff]
        %v334 = vld [vmem:[%s228 + $0x1a0] sm:$0xff]
        %v335 = vld [vmem:[%s228 + $0x1a8] sm:$0xff]
        %v336 = vld [vmem:[%s228 + $0x1b0] sm:$0xff]
        %v337 = vld [vmem:[%s228 + $0x1b8] sm:$0xff]
        %v338 = vld [vmem:[%s228 + $0x1c0] sm:$0xff]
        %v339 = vld [vmem:[%s228 + $0x1c8] sm:$0xff]
        %v340 = vld [vmem:[%s228 + $0x1d0] sm:$0xff]
        %v341 = vld [vmem:[%s228 + $0x1d8] sm:$0xff]
        %v342 = vld [vmem:[%s228 + $0x1e0] sm:$0xff]
        %v343 = vld [vmem:[%s228 + $0x1e8] sm:$0xff]
        %v344 = vld [vmem:[%s228 + $0x1f0] sm:$0xff]
        %v345 = vld [vmem:[%s228 + $0x1f8] sm:$0xff]
        %v346 = vld [vmem:[%s228 + $0x200] sm:$0xff]
        %v347 = vld [vmem:[%s228 + $0x208] sm:$0xff]
        %v348 = vld [vmem:[%s228 + $0x210] sm:$0xff]
        %v349 = vld [vmem:[%s228 + $0x218] sm:$0xff]
        %v350 = vld [vmem:[%s228 + $0x220] sm:$0xff]
        %v351 = vld [vmem:[%s228 + $0x228] sm:$0xff]
        %v352 = vld [vmem:[%s228 + $0x230] sm:$0xff]
        %v353 = vld [vmem:[%s228 + $0x238] sm:$0xff]
        %v354 = vld [vmem:[%s228 + $0x240] sm:$0xff]
        %v355 = vld [vmem:[%s228 + $0x248] sm:$0xff]
        %v356 = vld [vmem:[%s228 + $0x250] sm:$0xff]
        %v357 = vld [vmem:[%s228 + $0x258] sm:$0xff]
        %v358 = vld [vmem:[%s228 + $0x260] sm:$0xff]
        %v359 = vld [vmem:[%s228 + $0x268] sm:$0xff]
        %v360 = vld [vmem:[%s228 + $0x270] sm:$0xff]
        %v361 = vld [vmem:[%s228 + $0x278] sm:$0xff]
        %v362 = vld [vmem:[%s228 + $0x280] sm:$0xff]
        %v363 = vld [vmem:[%s228 + $0x288] sm:$0xff]
        %v364 = vld [vmem:[%s228 + $0x290] sm:$0xff]
        %v365 = vld [vmem:[%s228 + $0x298] sm:$0xff]
        %v366 = vld [vmem:[%s228 + $0x2a0] sm:$0xff]
        %v367 = vld [vmem:[%s228 + $0x2a8] sm:$0xff]
        %v368 = vld [vmem:[%s228 + $0x2b0] sm:$0xff]
        %v369 = vld [vmem:[%s228 + $0x2b8] sm:$0xff]
        %v370 = vld [vmem:[%s228 + $0x2c0] sm:$0xff]
        %v371 = vld [vmem:[%s228 + $0x2c8] sm:$0xff]
        %v372 = vld [vmem:[%s228 + $0x2d0] sm:$0xff]
        %v373 = vld [vmem:[%s228 + $0x2d8] sm:$0xff]
        %v374 = vld [vmem:[%s228 + $0x2e0] sm:$0xff]
        %v375 = vld [vmem:[%s228 + $0x2e8] sm:$0xff]
        %v376 = vld [vmem:[%s228 + $0x2f0] sm:$0xff]
        %v377 = vld [vmem:[%s228 + $0x2f8] sm:$0xff]
        %v378 = vld [vmem:[%s228 + $0x300] sm:$0xff]
        %v379 = vld [vmem:[%s228 + $0x308] sm:$0xff]
        %v380 = vld [vmem:[%s228 + $0x310] sm:$0xff]
        %v381 = vld [vmem:[%s228 + $0x318] sm:$0xff]
        %v382 = vld [vmem:[%s228 + $0x320] sm:$0xff]
        %v383 = vld [vmem:[%s228 + $0x328] sm:$0xff]
        %v384 = vld [vmem:[%s228 + $0x330] sm:$0xff]
        %v385 = vld [vmem:[%s228 + $0x338] sm:$0xff]
        %v386 = vld [vmem:[%s228 + $0x340] sm:$0xff]
        %v387 = vld [vmem:[%s228 + $0x348] sm:$0xff]
        %v388 = vld [vmem:[%s228 + $0x350] sm:$0xff]
        %v389 = vld [vmem:[%s228 + $0x358] sm:$0xff]
        %v390 = vld [vmem:[%s228 + $0x360] sm:$0xff]
        %v391 = vld [vmem:[%s228 + $0x368] sm:$0xff]
        %v392 = vld [vmem:[%s228 + $0x370] sm:$0xff]
        %v393 = vld [vmem:[%s228 + $0x378] sm:$0xff]
        %v394 = vld [vmem:[%s228 + $0x380] sm:$0xff]
        %v395 = vld [vmem:[%s228 + $0x388] sm:$0xff]
        %v396 = vld [vmem:[%s228 + $0x390] sm:$0xff]
        %v397 = vld [vmem:[%s228 + $0x398] sm:$0xff]
        %v398 = vld [vmem:[%s228 + $0x3a0] sm:$0xff]
        %v399 = vld [vmem:[%s228 + $0x3a8] sm:$0xff]
        %v400 = vld [vmem:[%s228 + $0x3b0] sm:$0xff]
        %v401 = vld [vmem:[%s228 + $0x3b8] sm:$0xff]
        %v402 = vld [vmem:[%s228 + $0x3c0] sm:$0xff]
        %v403 = vld [vmem:[%s228 + $0x3c8] sm:$0xff]
        %v404 = vld [vmem:[%s228 + $0x3d0] sm:$0xff]
        %v405 = vld [vmem:[%s228 + $0x3d8] sm:$0xff]
        %v406 = vld [vmem:[%s228 + $0x3e0] sm:$0xff]
        %v407 = vld [vmem:[%s228 + $0x3e8] sm:$0xff]
        %v408 = vld [vmem:[%s228 + $0x3f0] sm:$0xff]
        %v409 = vld [vmem:[%s228 + $0x3f8] sm:$0xff]
        %v410 = vld [vmem:[%s228 + $0x400] sm:$0xff]
        %v411 = vld [vmem:[%s228 + $0x408] sm:$0xff]
        %v412 = vld [vmem:[%s228 + $0x410] sm:$0xff]
        %v413 = vld [vmem:[%s228 + $0x418] sm:$0xff]
        %v414 = vld [vmem:[%s228 + $0x420] sm:$0xff]
        %v415 = vld [vmem:[%s228 + $0x428] sm:$0xff]
        %v416 = vld [vmem:[%s228 + $0x430] sm:$0xff]
        %v417 = vld [vmem:[%s228 + $0x438] sm:$0xff]
        %v418 = vld [vmem:[%s228 + $0x440] sm:$0xff]
        %v419 = vld [vmem:[%s228 + $0x448] sm:$0xff]
        %v420 = vld [vmem:[%s228 + $0x450] sm:$0xff]
        %v421 = vld [vmem:[%s228 + $0x458] sm:$0xff]
        %v422 = vld [vmem:[%s228 + $0x460] sm:$0xff]
        %v423 = vld [vmem:[%s228 + $0x468] sm:$0xff]
        %v424 = vld [vmem:[%s228 + $0x470] sm:$0xff]
        %v425 = vld [vmem:[%s228 + $0x478] sm:$0xff]
        %v426 = vld [vmem:[%s228 + $0x480] sm:$0xff]
        %v427 = vld [vmem:[%s228 + $0x488] sm:$0xff]
        %v428 = vld [vmem:[%s228 + $0x490] sm:$0xff]
        %v429 = vld [vmem:[%s228 + $0x498] sm:$0xff]
        %v430 = vld [vmem:[%s228 + $0x4a0] sm:$0xff]
        %v431 = vld [vmem:[%s228 + $0x4a8] sm:$0xff]
        %v432 = vld [vmem:[%s228 + $0x4b0] sm:$0xff]
        %v433 = vld [vmem:[%s228 + $0x4b8] sm:$0xff]
        %v434 = vld [vmem:[%s228 + $0x4c0] sm:$0xff]
        %v435 = vld [vmem:[%s228 + $0x4c8] sm:$0xff]
        %v436 = vld [vmem:[%s228 + $0x4d0] sm:$0xff]
        %v437 = vld [vmem:[%s228 + $0x4d8] sm:$0xff]
        %v438 = vld [vmem:[%s228 + $0x4e0] sm:$0xff]
        %v439 = vld [vmem:[%s228 + $0x4e8] sm:$0xff]
        %v440 = vld [vmem:[%s228 + $0x4f0] sm:$0xff]
        %v441 = vld [vmem:[%s228 + $0x4f8] sm:$0xff]
        %v442 = vld [vmem:[%s228 + $0x500] sm:$0xff]
        %v443 = vld [vmem:[%s228 + $0x508] sm:$0xff]
        %v444 = vld [vmem:[%s228 + $0x510] sm:$0xff]
        %v445 = vld [vmem:[%s228 + $0x518] sm:$0xff]
        %v446 = vld [vmem:[%s228 + $0x520] sm:$0xff]
        %v447 = vld [vmem:[%s228 + $0x528] sm:$0xff]
        %v448 = vld [vmem:[%s228 + $0x530] sm:$0xff]
        %v449 = vld [vmem:[%s228 + $0x538] sm:$0xff]
        %v450 = vld [vmem:[%s228 + $0x540] sm:$0xff]
        %v451 = vld [vmem:[%s228 + $0x548] sm:$0xff]
        %v452 = vld [vmem:[%s228 + $0x550] sm:$0xff]
        %v453 = vld [vmem:[%s228 + $0x558] sm:$0xff]
        %v454 = vld [vmem:[%s228 + $0x560] sm:$0xff]
        %v455 = vld [vmem:[%s228 + $0x568] sm:$0xff]
        %v456 = vld [vmem:[%s228 + $0x570] sm:$0xff]
        %v457 = vld [vmem:[%s228 + $0x578] sm:$0xff]
        %v458 = vld [vmem:[%s228 + $0x580] sm:$0xff]
        %v459 = vld [vmem:[%s228 + $0x588] sm:$0xff]
        %v460 = vld [vmem:[%s228 + $0x590] sm:$0xff]
        %v461 = vld [vmem:[%s228 + $0x598] sm:$0xff]
        %v462 = vld [vmem:[%s228 + $0x5a0] sm:$0xff]
        %v463 = vld [vmem:[%s228 + $0x5a8] sm:$0xff]
        %v464 = vld [vmem:[%s228 + $0x5b0] sm:$0xff]
        %v465 = vld [vmem:[%s228 + $0x5b8] sm:$0xff]
        %v466 = vld [vmem:[%s228 + $0x5c0] sm:$0xff]
        %v467 = vld [vmem:[%s228 + $0x5c8] sm:$0xff]
        %v468 = vld [vmem:[%s228 + $0x5d0] sm:$0xff]
        %v469 = vld [vmem:[%s228 + $0x5d8] sm:$0xff]
        %v470 = vld [vmem:[%s228 + $0x5e0] sm:$0xff]
        %v471 = vld [vmem:[%s228 + $0x5e8] sm:$0xff]
        %v472 = vld [vmem:[%s228 + $0x5f0] sm:$0xff]
        %v473 = vld [vmem:[%s228 + $0x5f8] sm:$0xff]
        %v474 = vld [vmem:[%s228 + $0x600] sm:$0xff]
        %v475 = vld [vmem:[%s228 + $0x608] sm:$0xff]
        %v476 = vld [vmem:[%s228 + $0x610] sm:$0xff]
        %v477 = vld [vmem:[%s228 + $0x618] sm:$0xff]
        %v478 = vld [vmem:[%s228 + $0x620] sm:$0xff]
        %v479 = vld [vmem:[%s228 + $0x628] sm:$0xff]
        %v480 = vld [vmem:[%s228 + $0x630] sm:$0xff]
        %v481 = vld [vmem:[%s228 + $0x638] sm:$0xff]
        %v482 = vld [vmem:[%s228 + $0x640] sm:$0xff]
        %v483 = vld [vmem:[%s228 + $0x648] sm:$0xff]
        %v484 = vld [vmem:[%s228 + $0x650] sm:$0xff]
        %v485 = vld [vmem:[%s228 + $0x658] sm:$0xff]
        %v486 = vld [vmem:[%s228 + $0x660] sm:$0xff]
        %v487 = vld [vmem:[%s228 + $0x668] sm:$0xff]
        %v488 = vld [vmem:[%s228 + $0x670] sm:$0xff]
        %v489 = vld [vmem:[%s228 + $0x678] sm:$0xff]
        %v490 = vld [vmem:[%s228 + $0x680] sm:$0xff]
        %v491 = vld [vmem:[%s228 + $0x688] sm:$0xff]
        %v492 = vld [vmem:[%s228 + $0x690] sm:$0xff]
        %v493 = vld [vmem:[%s228 + $0x698] sm:$0xff]
        %v494 = vld [vmem:[%s228 + $0x6a0] sm:$0xff]
        %v495 = vld [vmem:[%s228 + $0x6a8] sm:$0xff]
        %v496 = vld [vmem:[%s228 + $0x6b0] sm:$0xff]
        %v497 = vld [vmem:[%s228 + $0x6b8] sm:$0xff]
        %v498 = vld [vmem:[%s228 + $0x6c0] sm:$0xff]
        %v499 = vld [vmem:[%s228 + $0x6c8] sm:$0xff]
        %v500 = vld [vmem:[%s228 + $0x6d0] sm:$0xff]
        %v501 = vld [vmem:[%s228 + $0x6d8] sm:$0xff]
        %v502 = vld [vmem:[%s228 + $0x6e0] sm:$0xff]
        %v503 = vld [vmem:[%s228 + $0x6e8] sm:$0xff]
        %v504 = vld [vmem:[%s228 + $0x6f0] sm:$0xff]
        %v505 = vld [vmem:[%s228 + $0x6f8] sm:$0xff]
        %v506 = vld [vmem:[%s228 + $0x700] sm:$0xff]
        %v507 = vld [vmem:[%s228 + $0x708] sm:$0xff]
        %v508 = vld [vmem:[%s228 + $0x710] sm:$0xff]
        %v509 = vld [vmem:[%s228 + $0x718] sm:$0xff]
        %v510 = vld [vmem:[%s228 + $0x720] sm:$0xff]
        %v511 = vld [vmem:[%s228 + $0x728] sm:$0xff]
        %v512 = vld [vmem:[%s228 + $0x730] sm:$0xff]
        %v513 = vld [vmem:[%s228 + $0x738] sm:$0xff]
        %v514 = vld [vmem:[%s228 + $0x740] sm:$0xff]
        %v515 = vld [vmem:[%s228 + $0x748] sm:$0xff]
        %v516 = vld [vmem:[%s228 + $0x750] sm:$0xff]
        %v517 = vld [vmem:[%s228 + $0x758] sm:$0xff]
        %v518 = vld [vmem:[%s228 + $0x760] sm:$0xff]
        %v519 = vld [vmem:[%s228 + $0x768] sm:$0xff]
        %v520 = vld [vmem:[%s228 + $0x770] sm:$0xff]
        %v521 = vld [vmem:[%s228 + $0x778] sm:$0xff]
        %v522 = vld [vmem:[%s228 + $0x780] sm:$0xff]
        %v523 = vld [vmem:[%s228 + $0x788] sm:$0xff]
        %v524 = vld [vmem:[%s228 + $0x790] sm:$0xff]
        %v525 = vld [vmem:[%s228 + $0x798] sm:$0xff]
        %v526 = vld [vmem:[%s228 + $0x7a0] sm:$0xff]
        %v527 = vld [vmem:[%s228 + $0x7a8] sm:$0xff]
        %v528 = vld [vmem:[%s228 + $0x7b0] sm:$0xff]
        %v529 = vld [vmem:[%s228 + $0x7b8] sm:$0xff]
        %v530 = vld [vmem:[%s228 + $0x7c0] sm:$0xff]
        %v531 = vld [vmem:[%s228 + $0x7c8] sm:$0xff]
        %v532 = vld [vmem:[%s228 + $0x7d0] sm:$0xff]
        %v533 = vld [vmem:[%s228 + $0x7d8] sm:$0xff]
        %v534 = vld [vmem:[%s228 + $0x7e0] sm:$0xff]
        %v535 = vld [vmem:[%s228 + $0x7e8] sm:$0xff]
        %v536 = vld [vmem:[%s228 + $0x7f0] sm:$0xff]
        %v537 = vld [vmem:[%s228 + $0x7f8] sm:$0xff]
        %v538 = vld [vmem:[%s228 + $0x800] sm:$0xff]
        %v539 = vld [vmem:[%s228 + $0x808] sm:$0xff]
        %v540 = vld [vmem:[%s228 + $0x810] sm:$0xff]
        %v541 = vld [vmem:[%s228 + $0x818] sm:$0xff]
        %v542 = vld [vmem:[%s228 + $0x820] sm:$0xff]
        %v543 = vld [vmem:[%s228 + $0x828] sm:$0xff]
        %v544 = vld [vmem:[%s228 + $0x830] sm:$0xff]
        %v545 = vld [vmem:[%s228 + $0x838] sm:$0xff]
        %v546 = vld [vmem:[%s228 + $0x840] sm:$0xff]
        %v547 = vld [vmem:[%s228 + $0x848] sm:$0xff]
        %v548 = vld [vmem:[%s228 + $0x850] sm:$0xff]
        %v549 = vld [vmem:[%s228 + $0x858] sm:$0xff]
        %v550 = vld [vmem:[%s228 + $0x860] sm:$0xff]
        %v551 = vld [vmem:[%s228 + $0x868] sm:$0xff]
        %v552 = vld [vmem:[%s228 + $0x870] sm:$0xff]
        %v553 = vld [vmem:[%s228 + $0x878] sm:$0xff]
        %v554 = vld [vmem:[%s228 + $0x880] sm:$0xff]
        %v555 = vld [vmem:[%s228 + $0x888] sm:$0xff]
        %v556 = vld [vmem:[%s228 + $0x890] sm:$0xff]
        %v557 = vld [vmem:[%s228 + $0x898] sm:$0xff]
        %v558 = vld [vmem:[%s228 + $0x8a0] sm:$0xff]
        %v559 = vld [vmem:[%s228 + $0x8a8] sm:$0xff]
        %v560 = vld [vmem:[%s228 + $0x8b0] sm:$0xff]
        %v561 = vld [vmem:[%s228 + $0x8b8] sm:$0xff]
        %v562 = vld [vmem:[%s228 + $0x8c0] sm:$0xff]
        %v563 = vld [vmem:[%s228 + $0x8c8] sm:$0xff]
        %v564 = vld [vmem:[%s228 + $0x8d0] sm:$0xff]
        %v565 = vld [vmem:[%s228 + $0x8d8] sm:$0xff]
        %v566 = vld [vmem:[%s228 + $0x8e0] sm:$0xff]
        %v567 = vld [vmem:[%s228 + $0x8e8] sm:$0xff]
        %v568 = vld [vmem:[%s228 + $0x8f0] sm:$0xff]
        %v569 = vld [vmem:[%s228 + $0x8f8] sm:$0xff]
        %v570 = vld [vmem:[%s228 + $0x900] sm:$0xff]
        %v571 = vld [vmem:[%s228 + $0x908] sm:$0xff]
        %v572 = vld [vmem:[%s228 + $0x910] sm:$0xff]
        %v573 = vld [vmem:[%s228 + $0x918] sm:$0xff]
        %v574 = vld [vmem:[%s228 + $0x920] sm:$0xff]
        %v575 = vld [vmem:[%s228 + $0x928] sm:$0xff]
        %v576 = vld [vmem:[%s228 + $0x930] sm:$0xff]
        %v577 = vld [vmem:[%s228 + $0x938] sm:$0xff]
        %v578 = vld [vmem:[%s228 + $0x940] sm:$0xff]
        %v579 = vld [vmem:[%s228 + $0x948] sm:$0xff]
        %v580 = vld [vmem:[%s228 + $0x950] sm:$0xff]
        %v581 = vld [vmem:[%s228 + $0x958] sm:$0xff]
        %v582 = vld [vmem:[%s228 + $0x960] sm:$0xff]
        %v583 = vld [vmem:[%s228 + $0x968] sm:$0xff]
        %v584 = vld [vmem:[%s228 + $0x970] sm:$0xff]
        %v585 = vld [vmem:[%s228 + $0x978] sm:$0xff]
        %v586 = vld [vmem:[%s228 + $0x980] sm:$0xff]
        %v587 = vld [vmem:[%s228 + $0x988] sm:$0xff]
        %v588 = vld [vmem:[%s228 + $0x990] sm:$0xff]
        %v589 = vld [vmem:[%s228 + $0x998] sm:$0xff]
        %v590 = vld [vmem:[%s228 + $0x9a0] sm:$0xff]
        %v591 = vld [vmem:[%s228 + $0x9a8] sm:$0xff]
        %v592 = vld [vmem:[%s228 + $0x9b0] sm:$0xff]
        %v593 = vld [vmem:[%s228 + $0x9b8] sm:$0xff]
        %v594 = vld [vmem:[%s228 + $0x9c0] sm:$0xff]
        %v595 = vld [vmem:[%s228 + $0x9c8] sm:$0xff]
        %v596 = vld [vmem:[%s228 + $0x9d0] sm:$0xff]
        %v597 = vld [vmem:[%s228 + $0x9d8] sm:$0xff]
        %v598 = vld [vmem:[%s228 + $0x9e0] sm:$0xff]
        %v599 = vld [vmem:[%s228 + $0x9e8] sm:$0xff]
        %v600 = vld [vmem:[%s228 + $0x9f0] sm:$0xff]
        %v601 = vld [vmem:[%s228 + $0x9f8] sm:$0xff]
        %v602 = vld [vmem:[%s228 + $0xa00] sm:$0xff]
        %v603 = vld [vmem:[%s228 + $0xa08] sm:$0xff]
        %v604 = vld [vmem:[%s228 + $0xa10] sm:$0xff]
        %v605 = vld [vmem:[%s228 + $0xa18] sm:$0xff]
        %v606 = vld [vmem:[%s228 + $0xa20] sm:$0xff]
        %v607 = vld [vmem:[%s228 + $0xa28] sm:$0xff]
        %v608 = vld [vmem:[%s228 + $0xa30] sm:$0xff]
        %v609 = vld [vmem:[%s228 + $0xa38] sm:$0xff]
        %v610 = vld [vmem:[%s228 + $0xa40] sm:$0xff]
        %v611 = vld [vmem:[%s228 + $0xa48] sm:$0xff]
        %v612 = vld [vmem:[%s228 + $0xa50] sm:$0xff]
        %v613 = vld [vmem:[%s228 + $0xa58] sm:$0xff]
        %v614 = vld [vmem:[%s228 + $0xa60] sm:$0xff]
        %v615 = vld [vmem:[%s228 + $0xa68] sm:$0xff]
        %v616 = vld [vmem:[%s228 + $0xa70] sm:$0xff]
        %v617 = vld [vmem:[%s228 + $0xa78] sm:$0xff]
        %v618 = vld [vmem:[%s228 + $0xa80] sm:$0xff]
        %v619 = vld [vmem:[%s228 + $0xa88] sm:$0xff]
        %v620 = vld [vmem:[%s228 + $0xa90] sm:$0xff]
        %v621 = vld [vmem:[%s228 + $0xa98] sm:$0xff]
        %v622 = vld [vmem:[%s228 + $0xaa0] sm:$0xff]
        %v623 = vld [vmem:[%s228 + $0xaa8] sm:$0xff]
        %v624 = vld [vmem:[%s228 + $0xab0] sm:$0xff]
        %v625 = vld [vmem:[%s228 + $0xab8] sm:$0xff]
        %v626 = vld [vmem:[%s228 + $0xac0] sm:$0xff]
        %v627 = vld [vmem:[%s228 + $0xac8] sm:$0xff]
        %v628 = vld [vmem:[%s228 + $0xad0] sm:$0xff]
        %v629 = vld [vmem:[%s228 + $0xad8] sm:$0xff]
        %v630 = vld [vmem:[%s228 + $0xae0] sm:$0xff]
        %v631 = vld [vmem:[%s228 + $0xae8] sm:$0xff]
        %v632 = vld [vmem:[%s228 + $0xaf0] sm:$0xff]
        %v633 = vld [vmem:[%s228 + $0xaf8] sm:$0xff]
        %v634 = vld [vmem:[%s228 + $0xb00] sm:$0xff]
        %v635 = vld [vmem:[%s228 + $0xb08] sm:$0xff]
        %v636 = vld [vmem:[%s228 + $0xb10] sm:$0xff]
        %v637 = vld [vmem:[%s228 + $0xb18] sm:$0xff]
        %v638 = vld [vmem:[%s228 + $0xb20] sm:$0xff]
        %v639 = vld [vmem:[%s228 + $0xb28] sm:$0xff]
        %v640 = vld [vmem:[%s228 + $0xb30] sm:$0xff]
        %v641 = vld [vmem:[%s228 + $0xb38] sm:$0xff]
        %v642 = vld [vmem:[%s228 + $0xb40] sm:$0xff]
        %v643 = vld [vmem:[%s228 + $0xb48] sm:$0xff]
        %v644 = vld [vmem:[%s228 + $0xb50] sm:$0xff]
        %v645 = vld [vmem:[%s228 + $0xb58] sm:$0xff]
        %v646 = vld [vmem:[%s228 + $0xb60] sm:$0xff]
        %v647 = vld [vmem:[%s228 + $0xb68] sm:$0xff]
        %v648 = vld [vmem:[%s228 + $0xb70] sm:$0xff]
        %v649 = vld [vmem:[%s228 + $0xb78] sm:$0xff]
        %v650 = vld [vmem:[%s228 + $0xb80] sm:$0xff]
        %v651 = vld [vmem:[%s228 + $0xb88] sm:$0xff]
        %v652 = vld [vmem:[%s228 + $0xb90] sm:$0xff]
        %v653 = vld [vmem:[%s228 + $0xb98] sm:$0xff]
        %v654 = vld [vmem:[%s228 + $0xba0] sm:$0xff]
        %v655 = vld [vmem:[%s228 + $0xba8] sm:$0xff]
        %v656 = vld [vmem:[%s228 + $0xbb0] sm:$0xff]
        %v657 = vld [vmem:[%s228 + $0xbb8] sm:$0xff]
        %v658 = vld [vmem:[%s228 + $0xbc0] sm:$0xff]
        %v659 = vld [vmem:[%s228 + $0xbc8] sm:$0xff]
        %v660 = vld [vmem:[%s228 + $0xbd0] sm:$0xff]
        %v661 = vld [vmem:[%s228 + $0xbd8] sm:$0xff]
        %v662 = vld [vmem:[%s228 + $0xbe0] sm:$0xff]
        %v663 = vld [vmem:[%s228 + $0xbe8] sm:$0xff]
        %v664 = vld [vmem:[%s228 + $0xbf0] sm:$0xff]
        %v665 = vld [vmem:[%s228 + $0xbf8] sm:$0xff]
        %v666 = vld [vmem:[%s228 + $0xc00] sm:$0xff]
        %v667 = vld [vmem:[%s228 + $0xc08] sm:$0xff]
        %v668 = vld [vmem:[%s228 + $0xc10] sm:$0xff]
        %v669 = vld [vmem:[%s228 + $0xc18] sm:$0xff]
        %v670 = vld [vmem:[%s228 + $0xc20] sm:$0xff]
        %v671 = vld [vmem:[%s228 + $0xc28] sm:$0xff]
        %v672 = vld [vmem:[%s228 + $0xc30] sm:$0xff]
        %v673 = vld [vmem:[%s228 + $0xc38] sm:$0xff]
        %v674 = vld [vmem:[%s228 + $0xc40] sm:$0xff]
        %v675 = vld [vmem:[%s228 + $0xc48] sm:$0xff]
        %v676 = vld [vmem:[%s228 + $0xc50] sm:$0xff]
        %v677 = vld [vmem:[%s228 + $0xc58] sm:$0xff]
        %v678 = vld [vmem:[%s228 + $0xc60] sm:$0xff]
        %v679 = vld [vmem:[%s228 + $0xc68] sm:$0xff]
        %v680 = vld [vmem:[%s228 + $0xc70] sm:$0xff]
        %v681 = vld [vmem:[%s228 + $0xc78] sm:$0xff]
        %v682 = vld [vmem:[%s228 + $0xc80] sm:$0xff]
        %v683 = vld [vmem:[%s228 + $0xc88] sm:$0xff]
        %v684 = vld [vmem:[%s228 + $0xc90] sm:$0xff]
        %v685 = vld [vmem:[%s228 + $0xc98] sm:$0xff]
        %v686 = vld [vmem:[%s228 + $0xca0] sm:$0xff]
        %v687 = vld [vmem:[%s228 + $0xca8] sm:$0xff]
        %v688 = vld [vmem:[%s228 + $0xcb0] sm:$0xff]
        %v689 = vld [vmem:[%s228 + $0xcb8] sm:$0xff]
        %v690 = vld [vmem:[%s228 + $0xcc0] sm:$0xff]
        %v691 = vld [vmem:[%s228 + $0xcc8] sm:$0xff]
        %v692 = vld [vmem:[%s228 + $0xcd0] sm:$0xff]
        %v693 = vld [vmem:[%s228 + $0xcd8] sm:$0xff]
        %v694 = vld [vmem:[%s228 + $0xce0] sm:$0xff]
        %v695 = vld [vmem:[%s228 + $0xce8] sm:$0xff]
        %v696 = vld [vmem:[%s228 + $0xcf0] sm:$0xff]
        %v697 = vld [vmem:[%s228 + $0xcf8] sm:$0xff]
        %v698 = vld [vmem:[%s228 + $0xd00] sm:$0xff]
        %v699 = vld [vmem:[%s228 + $0xd08] sm:$0xff]
        %v700 = vld [vmem:[%s228 + $0xd10] sm:$0xff]
        %v701 = vld [vmem:[%s228 + $0xd18] sm:$0xff]
        %v702 = vld [vmem:[%s228 + $0xd20] sm:$0xff]
        %v703 = vld [vmem:[%s228 + $0xd28] sm:$0xff]
        %v704 = vld [vmem:[%s228 + $0xd30] sm:$0xff]
        %v705 = vld [vmem:[%s228 + $0xd38] sm:$0xff]
        %v706 = vld [vmem:[%s228 + $0xd40] sm:$0xff]
        %v707 = vld [vmem:[%s228 + $0xd48] sm:$0xff]
        %v708 = vld [vmem:[%s228 + $0xd50] sm:$0xff]
        %v709 = vld [vmem:[%s228 + $0xd58] sm:$0xff]
        %v710 = vld [vmem:[%s228 + $0xd60] sm:$0xff]
        %v711 = vld [vmem:[%s228 + $0xd68] sm:$0xff]
        %v712 = vld [vmem:[%s228 + $0xd70] sm:$0xff]
        %v713 = vld [vmem:[%s228 + $0xd78] sm:$0xff]
        %v714 = vld [vmem:[%s228 + $0xd80] sm:$0xff]
        %v715 = vld [vmem:[%s228 + $0xd88] sm:$0xff]
        %v716 = vld [vmem:[%s228 + $0xd90] sm:$0xff]
        %v717 = vld [vmem:[%s228 + $0xd98] sm:$0xff]
        %v718 = vld [vmem:[%s228 + $0xda0] sm:$0xff]
        %v719 = vld [vmem:[%s228 + $0xda8] sm:$0xff]
        %v720 = vld [vmem:[%s228 + $0xdb0] sm:$0xff]
        %v721 = vld [vmem:[%s228 + $0xdb8] sm:$0xff]
        %v722 = vld [vmem:[%s228 + $0xdc0] sm:$0xff]
        %v723 = vld [vmem:[%s228 + $0xdc8] sm:$0xff]
        %v724 = vld [vmem:[%s228 + $0xdd0] sm:$0xff]
        %v725 = vld [vmem:[%s228 + $0xdd8] sm:$0xff]
        %v726 = vld [vmem:[%s228 + $0xde0] sm:$0xff]
        %v727 = vld [vmem:[%s228 + $0xde8] sm:$0xff]
        %v728 = vld [vmem:[%s228 + $0xdf0] sm:$0xff]
        %v729 = vld [vmem:[%s228 + $0xdf8] sm:$0xff]
        %v730 = vld [vmem:[%s228 + $0xe00] sm:$0xff]
        %v731 = vld [vmem:[%s228 + $0xe08] sm:$0xff]
        %v732 = vld [vmem:[%s228 + $0xe10] sm:$0xff]
        %v733 = vld [vmem:[%s228 + $0xe18] sm:$0xff]
        %v734 = vld [vmem:[%s228 + $0xe20] sm:$0xff]
        %v735 = vld [vmem:[%s228 + $0xe28] sm:$0xff]
        %v736 = vld [vmem:[%s228 + $0xe30] sm:$0xff]
        %v737 = vld [vmem:[%s228 + $0xe38] sm:$0xff]
        %v738 = vld [vmem:[%s228 + $0xe40] sm:$0xff]
        %v739 = vld [vmem:[%s228 + $0xe48] sm:$0xff]
        %v740 = vld [vmem:[%s228 + $0xe50] sm:$0xff]
        %v741 = vld [vmem:[%s228 + $0xe58] sm:$0xff]
        %v742 = vld [vmem:[%s228 + $0xe60] sm:$0xff]
        %v743 = vld [vmem:[%s228 + $0xe68] sm:$0xff]
        %v744 = vld [vmem:[%s228 + $0xe70] sm:$0xff]
        %v745 = vld [vmem:[%s228 + $0xe78] sm:$0xff]
        %v746 = vld [vmem:[%s228 + $0xe80] sm:$0xff]
        %v747 = vld [vmem:[%s228 + $0xe88] sm:$0xff]
        %v748 = vld [vmem:[%s228 + $0xe90] sm:$0xff]
        %v749 = vld [vmem:[%s228 + $0xe98] sm:$0xff]
        %v750 = vld [vmem:[%s228 + $0xea0] sm:$0xff]
        %v751 = vld [vmem:[%s228 + $0xea8] sm:$0xff]
        %v752 = vld [vmem:[%s228 + $0xeb0] sm:$0xff]
        %v753 = vld [vmem:[%s228 + $0xeb8] sm:$0xff]
        %v754 = vld [vmem:[%s228 + $0xec0] sm:$0xff]
        %v755 = vld [vmem:[%s228 + $0xec8] sm:$0xff]
        %v756 = vld [vmem:[%s228 + $0xed0] sm:$0xff]
        %v757 = vld [vmem:[%s228 + $0xed8] sm:$0xff]
        %v758 = vld [vmem:[%s228 + $0xee0] sm:$0xff]
        %v759 = vld [vmem:[%s228 + $0xee8] sm:$0xff]
        %v760 = vld [vmem:[%s228 + $0xef0] sm:$0xff]
        %v761 = vld [vmem:[%s228 + $0xef8] sm:$0xff]
        %v762 = vld [vmem:[%s228 + $0xf00] sm:$0xff]
        %v763 = vld [vmem:[%s228 + $0xf08] sm:$0xff]
        %v764 = vld [vmem:[%s228 + $0xf10] sm:$0xff]
        %v765 = vld [vmem:[%s228 + $0xf18] sm:$0xff]
        %v766 = vld [vmem:[%s228 + $0xf20] sm:$0xff]
        %v767 = vld [vmem:[%s228 + $0xf28] sm:$0xff]
        %v768 = vld [vmem:[%s228 + $0xf30] sm:$0xff]
        %v769 = vld [vmem:[%s228 + $0xf38] sm:$0xff]
        %v770 = vld [vmem:[%s228 + $0xf40] sm:$0xff]
        %v771 = vld [vmem:[%s228 + $0xf48] sm:$0xff]
        %v772 = vld [vmem:[%s228 + $0xf50] sm:$0xff]
        %v773 = vld [vmem:[%s228 + $0xf58] sm:$0xff]
        %v774 = vld [vmem:[%s228 + $0xf60] sm:$0xff]
        %v775 = vld [vmem:[%s228 + $0xf68] sm:$0xff]
        %v776 = vld [vmem:[%s228 + $0xf70] sm:$0xff]
        %v777 = vld [vmem:[%s228 + $0xf78] sm:$0xff]
        %v778 = vld [vmem:[%s228 + $0xf80] sm:$0xff]
        %v779 = vld [vmem:[%s228 + $0xf88] sm:$0xff]
        %v780 = vld [vmem:[%s228 + $0xf90] sm:$0xff]
        %v781 = vld [vmem:[%s228 + $0xf98] sm:$0xff]
        %v782 = vld [vmem:[%s228 + $0xfa0] sm:$0xff]
        %v783 = vld [vmem:[%s228 + $0xfa8] sm:$0xff]
        %v784 = vld [vmem:[%s228 + $0xfb0] sm:$0xff]
        %v785 = vld [vmem:[%s228 + $0xfb8] sm:$0xff]
        %v786 = vld [vmem:[%s228 + $0xfc0] sm:$0xff]
        %v787 = vld [vmem:[%s228 + $0xfc8] sm:$0xff]
        %v788 = vld [vmem:[%s228 + $0xfd0] sm:$0xff]
        %v789 = vld [vmem:[%s228 + $0xfd8] sm:$0xff]
        %v790 = vld [vmem:[%s228 + $0xfe0] sm:$0xff]
        %v791 = vld [vmem:[%s228 + $0xfe8] sm:$0xff]
        %v792 = vld [vmem:[%s228 + $0xff0] sm:$0xff]
        %v793 = vld [vmem:[%s228 + $0xff8] sm:$0xff]
        %v794 = vld [vmem:[%s228 + $0x1000] sm:$0xff]
        %v795 = vld [vmem:[%s228 + $0x1008] sm:$0xff]
        %v796 = vld [vmem:[%s228 + $0x1010] sm:$0xff]
        %v797 = vld [vmem:[%s228 + $0x1018] sm:$0xff]
        %v798 = vld [vmem:[%s228 + $0x1020] sm:$0xff]
        %v799 = vld [vmem:[%s228 + $0x1028] sm:$0xff]
        %v800 = vld [vmem:[%s228 + $0x1030] sm:$0xff]
        %v801 = vld [vmem:[%s228 + $0x1038] sm:$0xff]
        %v802 = vld [vmem:[%s228 + $0x1040] sm:$0xff]
        %v803 = vld [vmem:[%s228 + $0x1048] sm:$0xff]
        %v804 = vld [vmem:[%s228 + $0x1050] sm:$0xff]
        %v805 = vld [vmem:[%s228 + $0x1058] sm:$0xff]
        %v806 = vld [vmem:[%s228 + $0x1060] sm:$0xff]
        %v807 = vld [vmem:[%s228 + $0x1068] sm:$0xff]
        %v808 = vld [vmem:[%s228 + $0x1070] sm:$0xff]
        %v809 = vld [vmem:[%s228 + $0x1078] sm:$0xff]
        %v810 = vld [vmem:[%s228 + $0x1080] sm:$0xff]
        %v811 = vld [vmem:[%s228 + $0x1088] sm:$0xff]
        %v812 = vld [vmem:[%s228 + $0x1090] sm:$0xff]
        %v813 = vld [vmem:[%s228 + $0x1098] sm:$0xff]
        %v814 = vld [vmem:[%s228 + $0x10a0] sm:$0xff]
        %v815 = vld [vmem:[%s228 + $0x10a8] sm:$0xff]
        %v816 = vld [vmem:[%s228 + $0x10b0] sm:$0xff]
        %v817 = vld [vmem:[%s228 + $0x10b8] sm:$0xff]
        %v818 = vld [vmem:[%s228 + $0x10c0] sm:$0xff]
        %v819 = vld [vmem:[%s228 + $0x10c8] sm:$0xff]
        %v820 = vld [vmem:[%s228 + $0x10d0] sm:$0xff]
        %v821 = vld [vmem:[%s228 + $0x10d8] sm:$0xff]
        %v822 = vld [vmem:[%s228 + $0x10e0] sm:$0xff]
        %v823 = vld [vmem:[%s228 + $0x10e8] sm:$0xff]
        %v824 = vld [vmem:[%s228 + $0x10f0] sm:$0xff]
        %v825 = vld [vmem:[%s228 + $0x10f8] sm:$0xff]
        %v826 = vld [vmem:[%s228 + $0x1100] sm:$0xff]
        %v827 = vld [vmem:[%s228 + $0x1108] sm:$0xff]
        %v828 = vld [vmem:[%s228 + $0x1110] sm:$0xff]
        %v829 = vld [vmem:[%s228 + $0x1118] sm:$0xff]
        %v830 = vld [vmem:[%s228 + $0x1120] sm:$0xff]
        %v831 = vld [vmem:[%s228 + $0x1128] sm:$0xff]
        %v832 = vld [vmem:[%s228 + $0x1130] sm:$0xff]
        %v833 = vld [vmem:[%s228 + $0x1138] sm:$0xff]
        %v834 = vld [vmem:[%s228 + $0x1140] sm:$0xff]
        %v835 = vld [vmem:[%s228 + $0x1148] sm:$0xff]
        %v836 = vld [vmem:[%s228 + $0x1150] sm:$0xff]
        %v837 = vld [vmem:[%s228 + $0x1158] sm:$0xff]
        %v838 = vld [vmem:[%s228 + $0x1160] sm:$0xff]
        %v839 = vld [vmem:[%s228 + $0x1168] sm:$0xff]
        %v840 = vld [vmem:[%s228 + $0x1170] sm:$0xff]
        %v841 = vld [vmem:[%s228 + $0x1178] sm:$0xff]
        %v842 = vld [vmem:[%s228 + $0x1180] sm:$0xff]
        %v843 = vld [vmem:[%s228 + $0x1188] sm:$0xff]
        %v844 = vld [vmem:[%s228 + $0x1190] sm:$0xff]
        %v845 = vld [vmem:[%s228 + $0x1198] sm:$0xff]
        %v846 = vld [vmem:[%s228 + $0x11a0] sm:$0xff]
        %v847 = vld [vmem:[%s228 + $0x11a8] sm:$0xff]
        %v848 = vld [vmem:[%s228 + $0x11b0] sm:$0xff]
        %v849 = vld [vmem:[%s228 + $0x11b8] sm:$0xff]
        %v850 = vld [vmem:[%s228 + $0x11c0] sm:$0xff]
        %v851 = vld [vmem:[%s228 + $0x11c8] sm:$0xff]
        %v852 = vld [vmem:[%s228 + $0x11d0] sm:$0xff]
        %v853 = vld [vmem:[%s228 + $0x11d8] sm:$0xff]
        %v854 = vld [vmem:[%s228 + $0x11e0] sm:$0xff]
        %v855 = vld [vmem:[%s228 + $0x11e8] sm:$0xff]
        %v856 = vld [vmem:[%s228 + $0x11f0] sm:$0xff]
        %v857 = vld [vmem:[%s228 + $0x11f8] sm:$0xff]
        %v858 = vld [vmem:[%s228 + $0x1200] sm:$0xff]
        %v859 = vld [vmem:[%s228 + $0x1208] sm:$0xff]
        %v860 = vld [vmem:[%s228 + $0x1210] sm:$0xff]
        %v861 = vld [vmem:[%s228 + $0x1218] sm:$0xff]
        %v862 = vld [vmem:[%s228 + $0x1220] sm:$0xff]
        %v863 = vld [vmem:[%s228 + $0x1228] sm:$0xff]
        %v864 = vld [vmem:[%s228 + $0x1230] sm:$0xff]
        %v865 = vld [vmem:[%s228 + $0x1238] sm:$0xff]
        %v866 = vld [vmem:[%s228 + $0x1240] sm:$0xff]
        %v867 = vld [vmem:[%s228 + $0x1248] sm:$0xff]
        %v868 = vld [vmem:[%s228 + $0x1250] sm:$0xff]
        %v869 = vld [vmem:[%s228 + $0x1258] sm:$0xff]
        %v870 = vld [vmem:[%s228 + $0x1260] sm:$0xff]
        %v871 = vld [vmem:[%s228 + $0x1268] sm:$0xff]
        %v872 = vld [vmem:[%s228 + $0x1270] sm:$0xff]
        %v873 = vld [vmem:[%s228 + $0x1278] sm:$0xff]
        %v874 = vld [vmem:[%s228 + $0x1280] sm:$0xff]
        %v875 = vld [vmem:[%s228 + $0x1288] sm:$0xff]
        %v876 = vld [vmem:[%s228 + $0x1290] sm:$0xff]
        %v877 = vld [vmem:[%s228 + $0x1298] sm:$0xff]
        %v878 = vld [vmem:[%s228 + $0x12a0] sm:$0xff]
        %v879 = vld [vmem:[%s228 + $0x12a8] sm:$0xff]
        %v880 = vld [vmem:[%s228 + $0x12b0] sm:$0xff]
        %v881 = vld [vmem:[%s228 + $0x12b8] sm:$0xff]
        %v882 = vld [vmem:[%s228 + $0x12c0] sm:$0xff]
        %v883 = vld [vmem:[%s228 + $0x12c8] sm:$0xff]
        %v884 = vld [vmem:[%s228 + $0x12d0] sm:$0xff]
        %v885 = vld [vmem:[%s228 + $0x12d8] sm:$0xff]
        %v886 = vld [vmem:[%s228 + $0x12e0] sm:$0xff]
        %v887 = vld [vmem:[%s228 + $0x12e8] sm:$0xff]
        %v888 = vld [vmem:[%s228 + $0x12f0] sm:$0xff]
        %v889 = vld [vmem:[%s228 + $0x12f8] sm:$0xff]
        %v890 = vld [vmem:[%s228 + $0x1300] sm:$0xff]
        %v891 = vld [vmem:[%s228 + $0x1308] sm:$0xff]
        %v892 = vld [vmem:[%s228 + $0x1310] sm:$0xff]
        %v893 = vld [vmem:[%s228 + $0x1318] sm:$0xff]
        %v894 = vld [vmem:[%s228 + $0x1320] sm:$0xff]
        %v895 = vld [vmem:[%s228 + $0x1328] sm:$0xff]
        %v896 = vld [vmem:[%s228 + $0x1330] sm:$0xff]
        %v897 = vld [vmem:[%s228 + $0x1338] sm:$0xff]
        %v898 = vld [vmem:[%s228 + $0x1340] sm:$0xff]
        %v899 = vld [vmem:[%s228 + $0x1348] sm:$0xff]
        %v900 = vld [vmem:[%s228 + $0x1350] sm:$0xff]
        %v901 = vld [vmem:[%s228 + $0x1358] sm:$0xff]
        %v902 = vld [vmem:[%s228 + $0x1360] sm:$0xff]
        %v903 = vld [vmem:[%s228 + $0x1368] sm:$0xff]
        %v904 = vld [vmem:[%s228 + $0x1370] sm:$0xff]
        %v905 = vld [vmem:[%s228 + $0x1378] sm:$0xff]
        %v906 = vld [vmem:[%s228 + $0x1380] sm:$0xff]
        %v907 = vld [vmem:[%s228 + $0x1388] sm:$0xff]
        %v908 = vld [vmem:[%s228 + $0x1390] sm:$0xff]
        %v909 = vld [vmem:[%s228 + $0x1398] sm:$0xff]
        %v910 = vld [vmem:[%s228 + $0x13a0] sm:$0xff]
        %v911 = vld [vmem:[%s228 + $0x13a8] sm:$0xff]
        %v912 = vld [vmem:[%s228 + $0x13b0] sm:$0xff]
        %v913 = vld [vmem:[%s228 + $0x13b8] sm:$0xff]
        %v914 = vld [vmem:[%s228 + $0x13c0] sm:$0xff]
        %v915 = vld [vmem:[%s228 + $0x13c8] sm:$0xff]
        %v916 = vld [vmem:[%s228 + $0x13d0] sm:$0xff]
        %v917 = vld [vmem:[%s228 + $0x13d8] sm:$0xff]
        %v918 = vld [vmem:[%s228 + $0x13e0] sm:$0xff]
        %v919 = vld [vmem:[%s228 + $0x13e8] sm:$0xff]
        %v920 = vld [vmem:[%s228 + $0x13f0] sm:$0xff]
        %v921 = vld [vmem:[%s228 + $0x13f8] sm:$0xff]
        %v922 = vld [vmem:[%s228 + $0x1400] sm:$0xff]
        %v923 = vld [vmem:[%s228 + $0x1408] sm:$0xff]
        %v924 = vld [vmem:[%s228 + $0x1410] sm:$0xff]
        %v925 = vld [vmem:[%s228 + $0x1418] sm:$0xff]
        %v926 = vld [vmem:[%s228 + $0x1420] sm:$0xff]
        %v927 = vld [vmem:[%s228 + $0x1428] sm:$0xff]
        %v928 = vld [vmem:[%s228 + $0x1430] sm:$0xff]
        %v929 = vld [vmem:[%s228 + $0x1438] sm:$0xff]
        %v930 = vld [vmem:[%s228 + $0x1440] sm:$0xff]
        %v931 = vld [vmem:[%s228 + $0x1448] sm:$0xff]
        %v932 = vld [vmem:[%s228 + $0x1450] sm:$0xff]
        %v933 = vld [vmem:[%s228 + $0x1458] sm:$0xff]
        %v934 = vld [vmem:[%s228 + $0x1460] sm:$0xff]
        %v935 = vld [vmem:[%s228 + $0x1468] sm:$0xff]
        %v936 = vld [vmem:[%s228 + $0x1470] sm:$0xff]
        %v937 = vld [vmem:[%s228 + $0x1478] sm:$0xff]
        %v938 = vld [vmem:[%s228 + $0x1480] sm:$0xff]
        %v939 = vld [vmem:[%s228 + $0x1488] sm:$0xff]
        %v940 = vld [vmem:[%s228 + $0x1490] sm:$0xff]
        %v941 = vld [vmem:[%s228 + $0x1498] sm:$0xff]
        %v942 = vld [vmem:[%s228 + $0x14a0] sm:$0xff]
        %v943 = vld [vmem:[%s228 + $0x14a8] sm:$0xff]
        %v944 = vld [vmem:[%s228 + $0x14b0] sm:$0xff]
        %v945 = vld [vmem:[%s228 + $0x14b8] sm:$0xff]
        %v946 = vld [vmem:[%s228 + $0x14c0] sm:$0xff]
        %v947 = vld [vmem:[%s228 + $0x14c8] sm:$0xff]
        %v948 = vld [vmem:[%s228 + $0x14d0] sm:$0xff]
        %v949 = vld [vmem:[%s228 + $0x14d8] sm:$0xff]
        %v950 = vld [vmem:[%s228 + $0x14e0] sm:$0xff]
        %v951 = vld [vmem:[%s228 + $0x14e8] sm:$0xff]
        %v952 = vld [vmem:[%s228 + $0x14f0] sm:$0xff]
        %v953 = vld [vmem:[%s228 + $0x14f8] sm:$0xff]
        %v954 = vld [vmem:[%s228 + $0x1500] sm:$0xff]
        %v955 = vld [vmem:[%s228 + $0x1508] sm:$0xff]
        %v956 = vld [vmem:[%s228 + $0x1510] sm:$0xff]
        %v957 = vld [vmem:[%s228 + $0x1518] sm:$0xff]
        %v958 = vld [vmem:[%s228 + $0x1520] sm:$0xff]
        %v959 = vld [vmem:[%s228 + $0x1528] sm:$0xff]
        %v960 = vld [vmem:[%s228 + $0x1530] sm:$0xff]
        %v961 = vld [vmem:[%s228 + $0x1538] sm:$0xff]
        %v962 = vld [vmem:[%s228 + $0x1540] sm:$0xff]
        %v963 = vld [vmem:[%s228 + $0x1548] sm:$0xff]
        %v964 = vld [vmem:[%s228 + $0x1550] sm:$0xff]
        %v965 = vld [vmem:[%s228 + $0x1558] sm:$0xff]
        %v966 = vld [vmem:[%s228 + $0x1560] sm:$0xff]
        %v967 = vld [vmem:[%s228 + $0x1568] sm:$0xff]
        %v968 = vld [vmem:[%s228 + $0x1570] sm:$0xff]
        %v969 = vld [vmem:[%s228 + $0x1578] sm:$0xff]
        %v970 = vld [vmem:[%s228 + $0x1580] sm:$0xff]
        %v971 = vld [vmem:[%s228 + $0x1588] sm:$0xff]
        %v972 = vld [vmem:[%s228 + $0x1590] sm:$0xff]
        %v973 = vld [vmem:[%s228 + $0x1598] sm:$0xff]
        %v974 = vld [vmem:[%s228 + $0x15a0] sm:$0xff]
        %v975 = vld [vmem:[%s228 + $0x15a8] sm:$0xff]
        %v976 = vld [vmem:[%s228 + $0x15b0] sm:$0xff]
        %v977 = vld [vmem:[%s228 + $0x15b8] sm:$0xff]
        %v978 = vld [vmem:[%s228 + $0x15c0] sm:$0xff]
        %v979 = vld [vmem:[%s228 + $0x15c8] sm:$0xff]
        %v980 = vld [vmem:[%s228 + $0x15d0] sm:$0xff]
        %v981 = vld [vmem:[%s228 + $0x15d8] sm:$0xff]
        %v982 = vld [vmem:[%s228 + $0x15e0] sm:$0xff]
        %v983 = vld [vmem:[%s228 + $0x15e8] sm:$0xff]
        %v984 = vld [vmem:[%s228 + $0x15f0] sm:$0xff]
        %v985 = vld [vmem:[%s228 + $0x15f8] sm:$0xff]
        %v986 = vld [vmem:[%s228 + $0x1600] sm:$0xff]
        %v987 = vld [vmem:[%s228 + $0x1608] sm:$0xff]
        %v988 = vld [vmem:[%s228 + $0x1610] sm:$0xff]
        %v989 = vld [vmem:[%s228 + $0x1618] sm:$0xff]
        %v990 = vld [vmem:[%s228 + $0x1620] sm:$0xff]
        %v991 = vld [vmem:[%s228 + $0x1628] sm:$0xff]
        %v992 = vld [vmem:[%s228 + $0x1630] sm:$0xff]
        %v993 = vld [vmem:[%s228 + $0x1638] sm:$0xff]
        %v994 = vld [vmem:[%s228 + $0x1640] sm:$0xff]
        %v995 = vld [vmem:[%s228 + $0x1648] sm:$0xff]
        %v996 = vld [vmem:[%s228 + $0x1650] sm:$0xff]
        %v997 = vld [vmem:[%s228 + $0x1658] sm:$0xff]
        %v998 = vld [vmem:[%s228 + $0x1660] sm:$0xff]
        %v999 = vld [vmem:[%s228 + $0x1668] sm:$0xff]
        %v1000 = vld [vmem:[%s228 + $0x1670] sm:$0xff]
        %v1001 = vld [vmem:[%s228 + $0x1678] sm:$0xff]
        %v1002 = vld [vmem:[%s228 + $0x1680] sm:$0xff]
        %v1003 = vld [vmem:[%s228 + $0x1688] sm:$0xff]
        %v1004 = vld [vmem:[%s228 + $0x1690] sm:$0xff]
        %v1005 = vld [vmem:[%s228 + $0x1698] sm:$0xff]
        %v1006 = vld [vmem:[%s228 + $0x16a0] sm:$0xff]
        %v1007 = vld [vmem:[%s228 + $0x16a8] sm:$0xff]
        %v1008 = vld [vmem:[%s228 + $0x16b0] sm:$0xff]
        %v1009 = vld [vmem:[%s228 + $0x16b8] sm:$0xff]
        %v1010 = vld [vmem:[%s228 + $0x16c0] sm:$0xff]
        %v1011 = vld [vmem:[%s228 + $0x16c8] sm:$0xff]
        %v1012 = vld [vmem:[%s228 + $0x16d0] sm:$0xff]
        %v1013 = vld [vmem:[%s228 + $0x16d8] sm:$0xff]
        %v1014 = vld [vmem:[%s228 + $0x16e0] sm:$0xff]
        %v1015 = vld [vmem:[%s228 + $0x16e8] sm:$0xff]
        %v1016 = vld [vmem:[%s228 + $0x16f0] sm:$0xff]
        %v1017 = vld [vmem:[%s228 + $0x16f8] sm:$0xff]
        %v1018 = vld [vmem:[%s228 + $0x1700] sm:$0xff]
        %v1019 = vld [vmem:[%s228 + $0x1708] sm:$0xff]
        %v1020 = vld [vmem:[%s228 + $0x1710] sm:$0xff]
        %v1021 = vld [vmem:[%s228 + $0x1718] sm:$0xff]
        %v1022 = vld [vmem:[%s228 + $0x1720] sm:$0xff]
        %v1023 = vld [vmem:[%s228 + $0x1728] sm:$0xff]
        %v1024 = vld [vmem:[%s228 + $0x1730] sm:$0xff]
        %v1025 = vld [vmem:[%s228 + $0x1738] sm:$0xff]
        %v1026 = vld [vmem:[%s228 + $0x1740] sm:$0xff]
        %v1027 = vld [vmem:[%s228 + $0x1748] sm:$0xff]
        %v1028 = vld [vmem:[%s228 + $0x1750] sm:$0xff]
        %v1029 = vld [vmem:[%s228 + $0x1758] sm:$0xff]
        %v1030 = vld [vmem:[%s228 + $0x1760] sm:$0xff]
        %v1031 = vld [vmem:[%s228 + $0x1768] sm:$0xff]
        %v1032 = vld [vmem:[%s228 + $0x1770] sm:$0xff]
        %v1033 = vld [vmem:[%s228 + $0x1778] sm:$0xff]
        %v1034 = vld [vmem:[%s228 + $0x1780] sm:$0xff]
        %v1035 = vld [vmem:[%s228 + $0x1788] sm:$0xff]
        %v1036 = vld [vmem:[%s228 + $0x1790] sm:$0xff]
        %v1037 = vld [vmem:[%s228 + $0x1798] sm:$0xff]
        %v1038 = vld [vmem:[%s228 + $0x17a0] sm:$0xff]
        %v1039 = vld [vmem:[%s228 + $0x17a8] sm:$0xff]
        %v1040 = vld [vmem:[%s228 + $0x17b0] sm:$0xff]
        %v1041 = vld [vmem:[%s228 + $0x17b8] sm:$0xff]
        %v1042 = vld [vmem:[%s228 + $0x17c0] sm:$0xff]
        %v1043 = vld [vmem:[%s228 + $0x17c8] sm:$0xff]
        %v1044 = vld [vmem:[%s228 + $0x17d0] sm:$0xff]
        %v1045 = vld [vmem:[%s228 + $0x17d8] sm:$0xff]
        %v1046 = vld [vmem:[%s228 + $0x17e0] sm:$0xff]
        %v1047 = vld [vmem:[%s228 + $0x17e8] sm:$0xff]
        %v1048 = vld [vmem:[%s228 + $0x17f0] sm:$0xff]
        %v1049 = vld [vmem:[%s228 + $0x17f8] sm:$0xff]
        %v1050 = vld [vmem:[%s228 + $0x1800] sm:$0xff]
        %v1051 = vld [vmem:[%s228 + $0x1808] sm:$0xff]
        %v1052 = vld [vmem:[%s228 + $0x1810] sm:$0xff]
        %v1053 = vld [vmem:[%s228 + $0x1818] sm:$0xff]
        %v1054 = vld [vmem:[%s228 + $0x1820] sm:$0xff]
        %v1055 = vld [vmem:[%s228 + $0x1828] sm:$0xff]
        %v1056 = vld [vmem:[%s228 + $0x1830] sm:$0xff]
        %v1057 = vld [vmem:[%s228 + $0x1838] sm:$0xff]
        %v1058 = vld [vmem:[%s228 + $0x1840] sm:$0xff]
        %v1059 = vld [vmem:[%s228 + $0x1848] sm:$0xff]
        %v1060 = vld [vmem:[%s228 + $0x1850] sm:$0xff]
        %v1061 = vld [vmem:[%s228 + $0x1858] sm:$0xff]
        %v1062 = vld [vmem:[%s228 + $0x1860] sm:$0xff]
        %v1063 = vld [vmem:[%s228 + $0x1868] sm:$0xff]
        %v1064 = vld [vmem:[%s228 + $0x1870] sm:$0xff]
        %v1065 = vld [vmem:[%s228 + $0x1878] sm:$0xff]
        %1079 = vst [vmem:[#allocation1] ss:$4 sm:$0xff] %v268
        %s1080 = scalar_lea.vmem [#allocation1], 32
        %1081 = vst [vmem:[%s1080] ss:$4 sm:$0xff] %v269
        %v1082 = vld.sshfl [vmem:[#allocation1] sm:$0xff pattern:$0x73625140]
        %v1083 = vld.sshfl [vmem:[#allocation1 + $0x8] sm:$0xff pattern:$0x73625140]
        %v1084 = vld.sshfl [vmem:[#allocation1 + $0x10] sm:$0xff pattern:$0x73625140]
        %v1085 = vld.sshfl [vmem:[#allocation1 + $0x18] sm:$0xff pattern:$0x73625140]
        %v1086 = vld.sshfl [vmem:[#allocation1 + $0x20] sm:$0xff pattern:$0x73625140]
        %v1087 = vld.sshfl [vmem:[#allocation1 + $0x28] sm:$0xff pattern:$0x73625140]
        %v1088 = vld.sshfl [vmem:[#allocation1 + $0x30] sm:$0xff pattern:$0x73625140]
        %v1089 = vld.sshfl [vmem:[#allocation1 + $0x38] sm:$0xff pattern:$0x73625140]
        %1090 = vst [vmem:[#allocation1] ss:$4 sm:$0xff] %v270
        %1091 = vst [vmem:[%s1080] ss:$4 sm:$0xff] %v271
        %v1092 = vld.sshfl [vmem:[#allocation1] sm:$0xff pattern:$0x73625140]
        %v1093 = vld.sshfl [vmem:[#allocation1 + $0x8] sm:$0xff pattern:$0x73625140]
        %v1094 = vld.sshfl [vmem:[#allocation1 + $0x10] sm:$0xff pattern:$0x73625140]
        %v1095 = vld.sshfl [vmem:[#allocation1 + $0x18] sm:$0xff pattern:$0x73625140]
        %v1096 = vld.sshfl [vmem:[#allocation1 + $0x20] sm:$0xff pattern:$0x73625140]
        %v1097 = vld.sshfl [vmem:[#allocation1 + $0x28] sm:$0xff pattern:$0x73625140]
        %v1098 = vld.sshfl [vmem:[#allocation1 + $0x30] sm:$0xff pattern:$0x73625140]
        %v1099 = vld.sshfl [vmem:[#allocation1 + $0x38] sm:$0xff pattern:$0x73625140]
        %1100 = vst [vmem:[#allocation1] ss:$4 sm:$0xff] %v272
        %1101 = vst [vmem:[%s1080] ss:$4 sm:$0xff] %v273
        %v1102 = vld.sshfl [vmem:[#allocation1] sm:$0xff pattern:$0x73625140]
        %v1103 = vld.sshfl [vmem:[#allocation1 + $0x8] sm:$0xff pattern:$0x73625140]
        %v1104 = vld.sshfl [vmem:[#allocation1 + $0x10] sm:$0xff pattern:$0x73625140]
        %v1105 = vld.sshfl [vmem:[#allocation1 + $0x18] sm:$0xff pattern:$0x73625140]
        %v1106 = vld.sshfl [vmem:[#allocation1 + $0x20] sm:$0xff pattern:$0x73625140]
        %v1107 = vld.sshfl [vmem:[#allocation1 + $0x28] sm:$0xff pattern:$0x73625140]
        %v1108 = vld.sshfl [vmem:[#allocation1 + $0x30] sm:$0xff pattern:$0x73625140]
        %v1109 = vld.sshfl [vmem:[#allocation1 + $0x38] sm:$0xff pattern:$0x73625140]
        %1110 = vst [vmem:[#allocation1] ss:$4 sm:$0xff] %v274
        %1111 = vst [vmem:[%s1080] ss:$4 sm:$0xff] %v275
        %v1112 = vld.sshfl [vmem:[#allocation1] sm:$0xff pattern:$0x73625140]
        %v1113 = vld.sshfl [vmem:[#allocation1 + $0x8] sm:$0xff pattern:$0x73625140]
        %v1114 = vld.sshfl [vmem:[#allocation1 + $0x10] sm:$0xff pattern:$0x73625140]
        %v1115 = vld.sshfl [vmem:[#allocation1 + $0x18] sm:$0xff pattern:$0x73625140]
        %v1116 = vld.sshfl [vmem:[#allocation1 + $0x20] sm:$0xff pattern:$0x73625140]
        %v1117 = vld.sshfl [vmem:[#allocation1 + $0x28] sm:$0xff pattern:$0x73625140]
        %v1118 = vld.sshfl [vmem:[#allocation1 + $0x30] sm:$0xff pattern:$0x73625140]
        %v1119 = vld.sshfl [vmem:[#allocation1 + $0x38] sm:$0xff pattern:$0x73625140]
        %1120 = vst [vmem:[#allocation1] ss:$4 sm:$0xff] %v276
        %1121 = vst [vmem:[%s1080] ss:$4 sm:$0xff] %v277
        %v1122 = vld.sshfl [vmem:[#allocation1] sm:$0xff pattern:$0x73625140]
        %v1123 = vld.sshfl [vmem:[#allocation1 + $0x8] sm:$0xff pattern:$0x73625140]
        %v1124 = vld.sshfl [vmem:[#allocation1 + $0x10] sm:$0xff pattern:$0x73625140]
        %v1125 = vld.sshfl [vmem:[#allocation1 + $0x18] sm:$0xff pattern:$0x73625140]
        %v1126 = vld.sshfl [vmem:[#allocation1 + $0x20] sm:$0xff pattern:$0x73625140]
        %v1127 = vld.sshfl [vmem:[#allocation1 + $0x28] sm:$0xff pattern:$0x73625140]
        %v1128 = vld.sshfl [vmem:[#allocation1 + $0x30] sm:$0xff pattern:$0x73625140]
        %v1129 = vld.sshfl [vmem:[#allocation1 + $0x38] sm:$0xff pattern:$0x73625140]
        %1130 = vst [vmem:[#allocation1] ss:$4 sm:$0xff] %v278
        %1131 = vst [vmem:[%s1080] ss:$4 sm:$0xff] %v279
        %v1132 = vld.sshfl [vmem:[#allocation1] sm:$0xff pattern:$0x73625140]
        %v1133 = vld.sshfl [vmem:[#allocation1 + $0x8] sm:$0xff pattern:$0x73625140]
        %v1134 = vld.sshfl [vmem:[#allocation1 + $0x10] sm:$0xff pattern:$0x73625140]
        %v1135 = vld.sshfl [vmem:[#allocation1 + $0x18] sm:$0xff pattern:$0x73625140]
        %v1136 = vld.sshfl [vmem:[#allocation1 + $0x20] sm:$0xff pattern:$0x73625140]
        %v1137 = vld.sshfl [vmem:[#allocation1 + $0x28] sm:$0xff pattern:$0x73625140]
        %v1138 = vld.sshfl [vmem:[#allocation1 + $0x30] sm:$0xff pattern:$0x73625140]
        %v1139 = vld.sshfl [vmem:[#allocation1 + $0x38] sm:$0xff pattern:$0x73625140]
        %1140 = vst [vmem:[#allocation1] ss:$4 sm:$0xff] %v280
        %v1141 = vld.sshfl [vmem:[#allocation1] sm:$0xff pattern:$0x73625140]
        %1191 = vmatpush.msra.mxu0 %v297
        %1192 = vmatpush.msra.mxu0 %v296
        %1193 = vmatpush.msra.mxu0 %v295
        %1194 = vmatpush.msra.mxu0 %v294
        %1195 = vmatpush.msra.mxu0 %v293
        %1196 = vmatpush.msra.mxu0 %v292
        %1197 = vmatpush.msra.mxu0 %v291
        %1198 = vmatpush.msra.mxu0 %v290
        %1199 = vmatpush.msra.mxu0 %v289
        %1200 = vmatpush.msra.mxu0 %v288
        %1201 = vmatpush.msra.mxu0 %v287
        %1202 = vmatpush.msra.mxu0 %v286
        %1203 = vmatpush.msra.mxu0 %v285
        %1204 = vmatpush.msra.mxu0 %v284
        %1205 = vmatpush.msra.mxu0 %v283
        %1206 = vmatpush.msra.mxu0 %v282
        %1207 = vmatmul.f32.gmra.mxu0 %v1082
        %v1208 = vpop.f32.mrf.mxu0
        %v1209 = vadd.f32 0.0, %v1208
        %1210 = vdwg.mxu0
        %1211 = vmatpush.msra.mxu0 %v313
        %1212 = vmatpush.msra.mxu0 %v312
        %1213 = vmatpush.msra.mxu0 %v311
        %1214 = vmatpush.msra.mxu0 %v310
        %1215 = vmatpush.msra.mxu0 %v309
        %1216 = vmatpush.msra.mxu0 %v308
        %1217 = vmatpush.msra.mxu0 %v307
        %1218 = vmatpush.msra.mxu0 %v306
        %1219 = vmatpush.msra.mxu0 %v305
        %1220 = vmatpush.msra.mxu0 %v304
        %1221 = vmatpush.msra.mxu0 %v303
        %1222 = vmatpush.msra.mxu0 %v302
        %1223 = vmatpush.msra.mxu0 %v301
        %1224 = vmatpush.msra.mxu0 %v300
        %1225 = vmatpush.msra.mxu0 %v299
        %1226 = vmatpush.msra.mxu0 %v298
        %1227 = vmatmul.f32.gmra.mxu0 %v1083
        %v1228 = vpop.f32.mrf.mxu0
        %v1229 = vadd.f32 %v1209, %v1228
        %1230 = vdwg.mxu0
        %1231 = vmatpush.msra.mxu0 %v329
        %1232 = vmatpush.msra.mxu0 %v328
        %1233 = vmatpush.msra.mxu0 %v327
        %1234 = vmatpush.msra.mxu0 %v326
        %1235 = vmatpush.msra.mxu0 %v325
        %1236 = vmatpush.msra.mxu0 %v324
        %1237 = vmatpush.msra.mxu0 %v323
        %1238 = vmatpush.msra.mxu0 %v322
        %1239 = vmatpush.msra.mxu0 %v321
        %1240 = vmatpush.msra.mxu0 %v320
        %1241 = vmatpush.msra.mxu0 %v319
        %1242 = vmatpush.msra.mxu0 %v318
        %1243 = vmatpush.msra.mxu0 %v317
        %1244 = vmatpush.msra.mxu0 %v316
        %1245 = vmatpush.msra.mxu0 %v315
        %1246 = vmatpush.msra.mxu0 %v314
        %1247 = vmatmul.f32.gmra.mxu0 %v1084
        %v1248 = vpop.f32.mrf.mxu0
        %v1249 = vadd.f32 %v1229, %v1248
        %1250 = vdwg.mxu0
        %1251 = vmatpush.msra.mxu0 %v345
        %1252 = vmatpush.msra.mxu0 %v344
        %1253 = vmatpush.msra.mxu0 %v343
        %1254 = vmatpush.msra.mxu0 %v342
        %1255 = vmatpush.msra.mxu0 %v341
        %1256 = vmatpush.msra.mxu0 %v340
        %1257 = vmatpush.msra.mxu0 %v339
        %1258 = vmatpush.msra.mxu0 %v338
        %1259 = vmatpush.msra.mxu0 %v337
        %1260 = vmatpush.msra.mxu0 %v336
        %1261 = vmatpush.msra.mxu0 %v335
        %1262 = vmatpush.msra.mxu0 %v334
        %1263 = vmatpush.msra.mxu0 %v333
        %1264 = vmatpush.msra.mxu0 %v332
        %1265 = vmatpush.msra.mxu0 %v331
        %1266 = vmatpush.msra.mxu0 %v330
        %1267 = vmatmul.f32.gmra.mxu0 %v1085
        %v1268 = vpop.f32.mrf.mxu0
        %v1269 = vadd.f32 %v1249, %v1268
        %1270 = vdwg.mxu0
        %1271 = vmatpush.msra.mxu0 %v361
        %1272 = vmatpush.msra.mxu0 %v360
        %1273 = vmatpush.msra.mxu0 %v359
        %1274 = vmatpush.msra.mxu0 %v358
        %1275 = vmatpush.msra.mxu0 %v357
        %1276 = vmatpush.msra.mxu0 %v356
        %1277 = vmatpush.msra.mxu0 %v355
        %1278 = vmatpush.msra.mxu0 %v354
        %1279 = vmatpush.msra.mxu0 %v353
        %1280 = vmatpush.msra.mxu0 %v352
        %1281 = vmatpush.msra.mxu0 %v351
        %1282 = vmatpush.msra.mxu0 %v350
        %1283 = vmatpush.msra.mxu0 %v349
        %1284 = vmatpush.msra.mxu0 %v348
        %1285 = vmatpush.msra.mxu0 %v347
        %1286 = vmatpush.msra.mxu0 %v346
        %1287 = vmatmul.f32.gmra.mxu0 %v1086
        %v1288 = vpop.f32.mrf.mxu0
        %v1289 = vadd.f32 %v1269, %v1288
        %1290 = vdwg.mxu0
        %1291 = vmatpush.msra.mxu0 %v377
        %1292 = vmatpush.msra.mxu0 %v376
        %1293 = vmatpush.msra.mxu0 %v375
        %1294 = vmatpush.msra.mxu0 %v374
        %1295 = vmatpush.msra.mxu0 %v373
        %1296 = vmatpush.msra.mxu0 %v372
        %1297 = vmatpush.msra.mxu0 %v371
        %1298 = vmatpush.msra.mxu0 %v370
        %1299 = vmatpush.msra.mxu0 %v369
        %1300 = vmatpush.msra.mxu0 %v368
        %1301 = vmatpush.msra.mxu0 %v367
        %1302 = vmatpush.msra.mxu0 %v366
        %1303 = vmatpush.msra.mxu0 %v365
        %1304 = vmatpush.msra.mxu0 %v364
        %1305 = vmatpush.msra.mxu0 %v363
        %1306 = vmatpush.msra.mxu0 %v362
        %1307 = vmatmul.f32.gmra.mxu0 %v1087
        %v1308 = vpop.f32.mrf.mxu0
        %v1309 = vadd.f32 %v1289, %v1308
        %1310 = vdwg.mxu0
        %1311 = vmatpush.msra.mxu0 %v393
        %1312 = vmatpush.msra.mxu0 %v392
        %1313 = vmatpush.msra.mxu0 %v391
        %1314 = vmatpush.msra.mxu0 %v390
        %1315 = vmatpush.msra.mxu0 %v389
        %1316 = vmatpush.msra.mxu0 %v388
        %1317 = vmatpush.msra.mxu0 %v387
        %1318 = vmatpush.msra.mxu0 %v386
        %1319 = vmatpush.msra.mxu0 %v385
        %1320 = vmatpush.msra.mxu0 %v384
        %1321 = vmatpush.msra.mxu0 %v383
        %1322 = vmatpush.msra.mxu0 %v382
        %1323 = vmatpush.msra.mxu0 %v381
        %1324 = vmatpush.msra.mxu0 %v380
        %1325 = vmatpush.msra.mxu0 %v379
        %1326 = vmatpush.msra.mxu0 %v378
        %1327 = vmatmul.f32.gmra.mxu0 %v1088
        %v1328 = vpop.f32.mrf.mxu0
        %v1329 = vadd.f32 %v1309, %v1328
        %1330 = vdwg.mxu0
        %1331 = vmatpush.msra.mxu0 %v409
        %1332 = vmatpush.msra.mxu0 %v408
        %1333 = vmatpush.msra.mxu0 %v407
        %1334 = vmatpush.msra.mxu0 %v406
        %1335 = vmatpush.msra.mxu0 %v405
        %1336 = vmatpush.msra.mxu0 %v404
        %1337 = vmatpush.msra.mxu0 %v403
        %1338 = vmatpush.msra.mxu0 %v402
        %1339 = vmatpush.msra.mxu0 %v401
        %1340 = vmatpush.msra.mxu0 %v400
        %1341 = vmatpush.msra.mxu0 %v399
        %1342 = vmatpush.msra.mxu0 %v398
        %1343 = vmatpush.msra.mxu0 %v397
        %1344 = vmatpush.msra.mxu0 %v396
        %1345 = vmatpush.msra.mxu0 %v395
        %1346 = vmatpush.msra.mxu0 %v394
        %1347 = vmatmul.f32.gmra.mxu0 %v1089
        %v1348 = vpop.f32.mrf.mxu0
        %v1349 = vadd.f32 %v1329, %v1348
        %1350 = vdwg.mxu0
        %1351 = vmatpush.msra.mxu0 %v425
        %1352 = vmatpush.msra.mxu0 %v424
        %1353 = vmatpush.msra.mxu0 %v423
        %1354 = vmatpush.msra.mxu0 %v422
        %1355 = vmatpush.msra.mxu0 %v421
        %1356 = vmatpush.msra.mxu0 %v420
        %1357 = vmatpush.msra.mxu0 %v419
        %1358 = vmatpush.msra.mxu0 %v418
        %1359 = vmatpush.msra.mxu0 %v417
        %1360 = vmatpush.msra.mxu0 %v416
        %1361 = vmatpush.msra.mxu0 %v415
        %1362 = vmatpush.msra.mxu0 %v414
        %1363 = vmatpush.msra.mxu0 %v413
        %1364 = vmatpush.msra.mxu0 %v412
        %1365 = vmatpush.msra.mxu0 %v411
        %1366 = vmatpush.msra.mxu0 %v410
        %1367 = vmatmul.f32.gmra.mxu0 %v1092
        %v1368 = vpop.f32.mrf.mxu0
        %v1369 = vadd.f32 %v1349, %v1368
        %1370 = vdwg.mxu0
        %1371 = vmatpush.msra.mxu0 %v441
        %1372 = vmatpush.msra.mxu0 %v440
        %1373 = vmatpush.msra.mxu0 %v439
        %1374 = vmatpush.msra.mxu0 %v438
        %1375 = vmatpush.msra.mxu0 %v437
        %1376 = vmatpush.msra.mxu0 %v436
        %1377 = vmatpush.msra.mxu0 %v435
        %1378 = vmatpush.msra.mxu0 %v434
        %1379 = vmatpush.msra.mxu0 %v433
        %1380 = vmatpush.msra.mxu0 %v432
        %1381 = vmatpush.msra.mxu0 %v431
        %1382 = vmatpush.msra.mxu0 %v430
        %1383 = vmatpush.msra.mxu0 %v429
        %1384 = vmatpush.msra.mxu0 %v428
        %1385 = vmatpush.msra.mxu0 %v427
        %1386 = vmatpush.msra.mxu0 %v426
        %1387 = vmatmul.f32.gmra.mxu0 %v1093
        %v1388 = vpop.f32.mrf.mxu0
        %v1389 = vadd.f32 %v1369, %v1388
        %1390 = vdwg.mxu0
        %1391 = vmatpush.msra.mxu0 %v457
        %1392 = vmatpush.msra.mxu0 %v456
        %1393 = vmatpush.msra.mxu0 %v455
        %1394 = vmatpush.msra.mxu0 %v454
        %1395 = vmatpush.msra.mxu0 %v453
        %1396 = vmatpush.msra.mxu0 %v452
        %1397 = vmatpush.msra.mxu0 %v451
        %1398 = vmatpush.msra.mxu0 %v450
        %1399 = vmatpush.msra.mxu0 %v449
        %1400 = vmatpush.msra.mxu0 %v448
        %1401 = vmatpush.msra.mxu0 %v447
        %1402 = vmatpush.msra.mxu0 %v446
        %1403 = vmatpush.msra.mxu0 %v445
        %1404 = vmatpush.msra.mxu0 %v444
        %1405 = vmatpush.msra.mxu0 %v443
        %1406 = vmatpush.msra.mxu0 %v442
        %1407 = vmatmul.f32.gmra.mxu0 %v1094
        %v1408 = vpop.f32.mrf.mxu0
        %v1409 = vadd.f32 %v1389, %v1408
        %1410 = vdwg.mxu0
        %1411 = vmatpush.msra.mxu0 %v473
        %1412 = vmatpush.msra.mxu0 %v472
        %1413 = vmatpush.msra.mxu0 %v471
        %1414 = vmatpush.msra.mxu0 %v470
        %1415 = vmatpush.msra.mxu0 %v469
        %1416 = vmatpush.msra.mxu0 %v468
        %1417 = vmatpush.msra.mxu0 %v467
        %1418 = vmatpush.msra.mxu0 %v466
        %1419 = vmatpush.msra.mxu0 %v465
        %1420 = vmatpush.msra.mxu0 %v464
        %1421 = vmatpush.msra.mxu0 %v463
        %1422 = vmatpush.msra.mxu0 %v462
        %1423 = vmatpush.msra.mxu0 %v461
        %1424 = vmatpush.msra.mxu0 %v460
        %1425 = vmatpush.msra.mxu0 %v459
        %1426 = vmatpush.msra.mxu0 %v458
        %1427 = vmatmul.f32.gmra.mxu0 %v1095
        %v1428 = vpop.f32.mrf.mxu0
        %v1429 = vadd.f32 %v1409, %v1428
        %1430 = vdwg.mxu0
        %1431 = vmatpush.msra.mxu0 %v489
        %1432 = vmatpush.msra.mxu0 %v488
        %1433 = vmatpush.msra.mxu0 %v487
        %1434 = vmatpush.msra.mxu0 %v486
        %1435 = vmatpush.msra.mxu0 %v485
        %1436 = vmatpush.msra.mxu0 %v484
        %1437 = vmatpush.msra.mxu0 %v483
        %1438 = vmatpush.msra.mxu0 %v482
        %1439 = vmatpush.msra.mxu0 %v481
        %1440 = vmatpush.msra.mxu0 %v480
        %1441 = vmatpush.msra.mxu0 %v479
        %1442 = vmatpush.msra.mxu0 %v478
        %1443 = vmatpush.msra.mxu0 %v477
        %1444 = vmatpush.msra.mxu0 %v476
        %1445 = vmatpush.msra.mxu0 %v475
        %1446 = vmatpush.msra.mxu0 %v474
        %1447 = vmatmul.f32.gmra.mxu0 %v1096
        %v1448 = vpop.f32.mrf.mxu0
        %v1449 = vadd.f32 %v1429, %v1448
        %1450 = vdwg.mxu0
        %1451 = vmatpush.msra.mxu0 %v505
        %1452 = vmatpush.msra.mxu0 %v504
        %1453 = vmatpush.msra.mxu0 %v503
        %1454 = vmatpush.msra.mxu0 %v502
        %1455 = vmatpush.msra.mxu0 %v501
        %1456 = vmatpush.msra.mxu0 %v500
        %1457 = vmatpush.msra.mxu0 %v499
        %1458 = vmatpush.msra.mxu0 %v498
        %1459 = vmatpush.msra.mxu0 %v497
        %1460 = vmatpush.msra.mxu0 %v496
        %1461 = vmatpush.msra.mxu0 %v495
        %1462 = vmatpush.msra.mxu0 %v494
        %1463 = vmatpush.msra.mxu0 %v493
        %1464 = vmatpush.msra.mxu0 %v492
        %1465 = vmatpush.msra.mxu0 %v491
        %1466 = vmatpush.msra.mxu0 %v490
        %1467 = vmatmul.f32.gmra.mxu0 %v1097
        %v1468 = vpop.f32.mrf.mxu0
        %v1469 = vadd.f32 %v1449, %v1468
        %1470 = vdwg.mxu0
        %1471 = vmatpush.msra.mxu0 %v521
        %1472 = vmatpush.msra.mxu0 %v520
        %1473 = vmatpush.msra.mxu0 %v519
        %1474 = vmatpush.msra.mxu0 %v518
        %1475 = vmatpush.msra.mxu0 %v517
        %1476 = vmatpush.msra.mxu0 %v516
        %1477 = vmatpush.msra.mxu0 %v515
        %1478 = vmatpush.msra.mxu0 %v514
        %1479 = vmatpush.msra.mxu0 %v513
        %1480 = vmatpush.msra.mxu0 %v512
        %1481 = vmatpush.msra.mxu0 %v511
        %1482 = vmatpush.msra.mxu0 %v510
        %1483 = vmatpush.msra.mxu0 %v509
        %1484 = vmatpush.msra.mxu0 %v508
        %1485 = vmatpush.msra.mxu0 %v507
        %1486 = vmatpush.msra.mxu0 %v506
        %1487 = vmatmul.f32.gmra.mxu0 %v1098
        %v1488 = vpop.f32.mrf.mxu0
        %v1489 = vadd.f32 %v1469, %v1488
        %1490 = vdwg.mxu0
        %1491 = vmatpush.msra.mxu0 %v537
        %1492 = vmatpush.msra.mxu0 %v536
        %1493 = vmatpush.msra.mxu0 %v535
        %1494 = vmatpush.msra.mxu0 %v534
        %1495 = vmatpush.msra.mxu0 %v533
        %1496 = vmatpush.msra.mxu0 %v532
        %1497 = vmatpush.msra.mxu0 %v531
        %1498 = vmatpush.msra.mxu0 %v530
        %1499 = vmatpush.msra.mxu0 %v529
        %1500 = vmatpush.msra.mxu0 %v528
        %1501 = vmatpush.msra.mxu0 %v527
        %1502 = vmatpush.msra.mxu0 %v526
        %1503 = vmatpush.msra.mxu0 %v525
        %1504 = vmatpush.msra.mxu0 %v524
        %1505 = vmatpush.msra.mxu0 %v523
        %1506 = vmatpush.msra.mxu0 %v522
        %1507 = vmatmul.f32.gmra.mxu0 %v1099
        %v1508 = vpop.f32.mrf.mxu0
        %v1509 = vadd.f32 %v1489, %v1508
        %1510 = vdwg.mxu0
        %1511 = vmatpush.msra.mxu0 %v553
        %1512 = vmatpush.msra.mxu0 %v552
        %1513 = vmatpush.msra.mxu0 %v551
        %1514 = vmatpush.msra.mxu0 %v550
        %1515 = vmatpush.msra.mxu0 %v549
        %1516 = vmatpush.msra.mxu0 %v548
        %1517 = vmatpush.msra.mxu0 %v547
        %1518 = vmatpush.msra.mxu0 %v546
        %1519 = vmatpush.msra.mxu0 %v545
        %1520 = vmatpush.msra.mxu0 %v544
        %1521 = vmatpush.msra.mxu0 %v543
        %1522 = vmatpush.msra.mxu0 %v542
        %1523 = vmatpush.msra.mxu0 %v541
        %1524 = vmatpush.msra.mxu0 %v540
        %1525 = vmatpush.msra.mxu0 %v539
        %1526 = vmatpush.msra.mxu0 %v538
        %1527 = vmatmul.f32.gmra.mxu0 %v1102
        %v1528 = vpop.f32.mrf.mxu0
        %v1529 = vadd.f32 %v1509, %v1528
        %1530 = vdwg.mxu0
        %1531 = vmatpush.msra.mxu0 %v569
        %1532 = vmatpush.msra.mxu0 %v568
        %1533 = vmatpush.msra.mxu0 %v567
        %1534 = vmatpush.msra.mxu0 %v566
        %1535 = vmatpush.msra.mxu0 %v565
        %1536 = vmatpush.msra.mxu0 %v564
        %1537 = vmatpush.msra.mxu0 %v563
        %1538 = vmatpush.msra.mxu0 %v562
        %1539 = vmatpush.msra.mxu0 %v561
        %1540 = vmatpush.msra.mxu0 %v560
        %1541 = vmatpush.msra.mxu0 %v559
        %1542 = vmatpush.msra.mxu0 %v558
        %1543 = vmatpush.msra.mxu0 %v557
        %1544 = vmatpush.msra.mxu0 %v556
        %1545 = vmatpush.msra.mxu0 %v555
        %1546 = vmatpush.msra.mxu0 %v554
        %1547 = vmatmul.f32.gmra.mxu0 %v1103
        %v1548 = vpop.f32.mrf.mxu0
        %v1549 = vadd.f32 %v1529, %v1548
        %1550 = vdwg.mxu0
        %1551 = vmatpush.msra.mxu0 %v585
        %1552 = vmatpush.msra.mxu0 %v584
        %1553 = vmatpush.msra.mxu0 %v583
        %1554 = vmatpush.msra.mxu0 %v582
        %1555 = vmatpush.msra.mxu0 %v581
        %1556 = vmatpush.msra.mxu0 %v580
        %1557 = vmatpush.msra.mxu0 %v579
        %1558 = vmatpush.msra.mxu0 %v578
        %1559 = vmatpush.msra.mxu0 %v577
        %1560 = vmatpush.msra.mxu0 %v576
        %1561 = vmatpush.msra.mxu0 %v575
        %1562 = vmatpush.msra.mxu0 %v574
        %1563 = vmatpush.msra.mxu0 %v573
        %1564 = vmatpush.msra.mxu0 %v572
        %1565 = vmatpush.msra.mxu0 %v571
        %1566 = vmatpush.msra.mxu0 %v570
        %1567 = vmatmul.f32.gmra.mxu0 %v1104
        %v1568 = vpop.f32.mrf.mxu0
        %v1569 = vadd.f32 %v1549, %v1568
        %1570 = vdwg.mxu0
        %1571 = vmatpush.msra.mxu0 %v601
        %1572 = vmatpush.msra.mxu0 %v600
        %1573 = vmatpush.msra.mxu0 %v599
        %1574 = vmatpush.msra.mxu0 %v598
        %1575 = vmatpush.msra.mxu0 %v597
        %1576 = vmatpush.msra.mxu0 %v596
        %1577 = vmatpush.msra.mxu0 %v595
        %1578 = vmatpush.msra.mxu0 %v594
        %1579 = vmatpush.msra.mxu0 %v593
        %1580 = vmatpush.msra.mxu0 %v592
        %1581 = vmatpush.msra.mxu0 %v591
        %1582 = vmatpush.msra.mxu0 %v590
        %1583 = vmatpush.msra.mxu0 %v589
        %1584 = vmatpush.msra.mxu0 %v588
        %1585 = vmatpush.msra.mxu0 %v587
        %1586 = vmatpush.msra.mxu0 %v586
        %1587 = vmatmul.f32.gmra.mxu0 %v1105
        %v1588 = vpop.f32.mrf.mxu0
        %v1589 = vadd.f32 %v1569, %v1588
        %1590 = vdwg.mxu0
        %1591 = vmatpush.msra.mxu0 %v617
        %1592 = vmatpush.msra.mxu0 %v616
        %1593 = vmatpush.msra.mxu0 %v615
        %1594 = vmatpush.msra.mxu0 %v614
        %1595 = vmatpush.msra.mxu0 %v613
        %1596 = vmatpush.msra.mxu0 %v612
        %1597 = vmatpush.msra.mxu0 %v611
        %1598 = vmatpush.msra.mxu0 %v610
        %1599 = vmatpush.msra.mxu0 %v609
        %1600 = vmatpush.msra.mxu0 %v608
        %1601 = vmatpush.msra.mxu0 %v607
        %1602 = vmatpush.msra.mxu0 %v606
        %1603 = vmatpush.msra.mxu0 %v605
        %1604 = vmatpush.msra.mxu0 %v604
        %1605 = vmatpush.msra.mxu0 %v603
        %1606 = vmatpush.msra.mxu0 %v602
        %1607 = vmatmul.f32.gmra.mxu0 %v1106
        %v1608 = vpop.f32.mrf.mxu0
        %v1609 = vadd.f32 %v1589, %v1608
        %1610 = vdwg.mxu0
        %1611 = vmatpush.msra.mxu0 %v633
        %1612 = vmatpush.msra.mxu0 %v632
        %1613 = vmatpush.msra.mxu0 %v631
        %1614 = vmatpush.msra.mxu0 %v630
        %1615 = vmatpush.msra.mxu0 %v629
        %1616 = vmatpush.msra.mxu0 %v628
        %1617 = vmatpush.msra.mxu0 %v627
        %1618 = vmatpush.msra.mxu0 %v626
        %1619 = vmatpush.msra.mxu0 %v625
        %1620 = vmatpush.msra.mxu0 %v624
        %1621 = vmatpush.msra.mxu0 %v623
        %1622 = vmatpush.msra.mxu0 %v622
        %1623 = vmatpush.msra.mxu0 %v621
        %1624 = vmatpush.msra.mxu0 %v620
        %1625 = vmatpush.msra.mxu0 %v619
        %1626 = vmatpush.msra.mxu0 %v618
        %1627 = vmatmul.f32.gmra.mxu0 %v1107
        %v1628 = vpop.f32.mrf.mxu0
        %v1629 = vadd.f32 %v1609, %v1628
        %1630 = vdwg.mxu0
        %1631 = vmatpush.msra.mxu0 %v649
        %1632 = vmatpush.msra.mxu0 %v648
        %1633 = vmatpush.msra.mxu0 %v647
        %1634 = vmatpush.msra.mxu0 %v646
        %1635 = vmatpush.msra.mxu0 %v645
        %1636 = vmatpush.msra.mxu0 %v644
        %1637 = vmatpush.msra.mxu0 %v643
        %1638 = vmatpush.msra.mxu0 %v642
        %1639 = vmatpush.msra.mxu0 %v641
        %1640 = vmatpush.msra.mxu0 %v640
        %1641 = vmatpush.msra.mxu0 %v639
        %1642 = vmatpush.msra.mxu0 %v638
        %1643 = vmatpush.msra.mxu0 %v637
        %1644 = vmatpush.msra.mxu0 %v636
        %1645 = vmatpush.msra.mxu0 %v635
        %1646 = vmatpush.msra.mxu0 %v634
        %1647 = vmatmul.f32.gmra.mxu0 %v1108
        %v1648 = vpop.f32.mrf.mxu0
        %v1649 = vadd.f32 %v1629, %v1648
        %1650 = vdwg.mxu0
        %1651 = vmatpush.msra.mxu0 %v665
        %1652 = vmatpush.msra.mxu0 %v664
        %1653 = vmatpush.msra.mxu0 %v663
        %1654 = vmatpush.msra.mxu0 %v662
        %1655 = vmatpush.msra.mxu0 %v661
        %1656 = vmatpush.msra.mxu0 %v660
        %1657 = vmatpush.msra.mxu0 %v659
        %1658 = vmatpush.msra.mxu0 %v658
        %1659 = vmatpush.msra.mxu0 %v657
        %1660 = vmatpush.msra.mxu0 %v656
        %1661 = vmatpush.msra.mxu0 %v655
        %1662 = vmatpush.msra.mxu0 %v654
        %1663 = vmatpush.msra.mxu0 %v653
        %1664 = vmatpush.msra.mxu0 %v652
        %1665 = vmatpush.msra.mxu0 %v651
        %1666 = vmatpush.msra.mxu0 %v650
        %1667 = vmatmul.f32.gmra.mxu0 %v1109
        %v1668 = vpop.f32.mrf.mxu0
        %v1669 = vadd.f32 %v1649, %v1668
        %1670 = vdwg.mxu0
        %1671 = vmatpush.msra.mxu0 %v681
        %1672 = vmatpush.msra.mxu0 %v680
        %1673 = vmatpush.msra.mxu0 %v679
        %1674 = vmatpush.msra.mxu0 %v678
        %1675 = vmatpush.msra.mxu0 %v677
        %1676 = vmatpush.msra.mxu0 %v676
        %1677 = vmatpush.msra.mxu0 %v675
        %1678 = vmatpush.msra.mxu0 %v674
        %1679 = vmatpush.msra.mxu0 %v673
        %1680 = vmatpush.msra.mxu0 %v672
        %1681 = vmatpush.msra.mxu0 %v671
        %1682 = vmatpush.msra.mxu0 %v670
        %1683 = vmatpush.msra.mxu0 %v669
        %1684 = vmatpush.msra.mxu0 %v668
        %1685 = vmatpush.msra.mxu0 %v667
        %1686 = vmatpush.msra.mxu0 %v666
        %1687 = vmatmul.f32.gmra.mxu0 %v1112
        %v1688 = vpop.f32.mrf.mxu0
        %v1689 = vadd.f32 %v1669, %v1688
        %1690 = vdwg.mxu0
        %1691 = vmatpush.msra.mxu0 %v697
        %1692 = vmatpush.msra.mxu0 %v696
        %1693 = vmatpush.msra.mxu0 %v695
        %1694 = vmatpush.msra.mxu0 %v694
        %1695 = vmatpush.msra.mxu0 %v693
        %1696 = vmatpush.msra.mxu0 %v692
        %1697 = vmatpush.msra.mxu0 %v691
        %1698 = vmatpush.msra.mxu0 %v690
        %1699 = vmatpush.msra.mxu0 %v689
        %1700 = vmatpush.msra.mxu0 %v688
        %1701 = vmatpush.msra.mxu0 %v687
        %1702 = vmatpush.msra.mxu0 %v686
        %1703 = vmatpush.msra.mxu0 %v685
        %1704 = vmatpush.msra.mxu0 %v684
        %1705 = vmatpush.msra.mxu0 %v683
        %1706 = vmatpush.msra.mxu0 %v682
        %1707 = vmatmul.f32.gmra.mxu0 %v1113
        %v1708 = vpop.f32.mrf.mxu0
        %v1709 = vadd.f32 %v1689, %v1708
        %1710 = vdwg.mxu0
        %1711 = vmatpush.msra.mxu0 %v713
        %1712 = vmatpush.msra.mxu0 %v712
        %1713 = vmatpush.msra.mxu0 %v711
        %1714 = vmatpush.msra.mxu0 %v710
        %1715 = vmatpush.msra.mxu0 %v709
        %1716 = vmatpush.msra.mxu0 %v708
        %1717 = vmatpush.msra.mxu0 %v707
        %1718 = vmatpush.msra.mxu0 %v706
        %1719 = vmatpush.msra.mxu0 %v705
        %1720 = vmatpush.msra.mxu0 %v704
        %1721 = vmatpush.msra.mxu0 %v703
        %1722 = vmatpush.msra.mxu0 %v702
        %1723 = vmatpush.msra.mxu0 %v701
        %1724 = vmatpush.msra.mxu0 %v700
        %1725 = vmatpush.msra.mxu0 %v699
        %1726 = vmatpush.msra.mxu0 %v698
        %1727 = vmatmul.f32.gmra.mxu0 %v1114
        %v1728 = vpop.f32.mrf.mxu0
        %v1729 = vadd.f32 %v1709, %v1728
        %1730 = vdwg.mxu0
        %1731 = vmatpush.msra.mxu0 %v729
        %1732 = vmatpush.msra.mxu0 %v728
        %1733 = vmatpush.msra.mxu0 %v727
        %1734 = vmatpush.msra.mxu0 %v726
        %1735 = vmatpush.msra.mxu0 %v725
        %1736 = vmatpush.msra.mxu0 %v724
        %1737 = vmatpush.msra.mxu0 %v723
        %1738 = vmatpush.msra.mxu0 %v722
        %1739 = vmatpush.msra.mxu0 %v721
        %1740 = vmatpush.msra.mxu0 %v720
        %1741 = vmatpush.msra.mxu0 %v719
        %1742 = vmatpush.msra.mxu0 %v718
        %1743 = vmatpush.msra.mxu0 %v717
        %1744 = vmatpush.msra.mxu0 %v716
        %1745 = vmatpush.msra.mxu0 %v715
        %1746 = vmatpush.msra.mxu0 %v714
        %1747 = vmatmul.f32.gmra.mxu0 %v1115
        %v1748 = vpop.f32.mrf.mxu0
        %v1749 = vadd.f32 %v1729, %v1748
        %1750 = vdwg.mxu0
        %1751 = vmatpush.msra.mxu0 %v745
        %1752 = vmatpush.msra.mxu0 %v744
        %1753 = vmatpush.msra.mxu0 %v743
        %1754 = vmatpush.msra.mxu0 %v742
        %1755 = vmatpush.msra.mxu0 %v741
        %1756 = vmatpush.msra.mxu0 %v740
        %1757 = vmatpush.msra.mxu0 %v739
        %1758 = vmatpush.msra.mxu0 %v738
        %1759 = vmatpush.msra.mxu0 %v737
        %1760 = vmatpush.msra.mxu0 %v736
        %1761 = vmatpush.msra.mxu0 %v735
        %1762 = vmatpush.msra.mxu0 %v734
        %1763 = vmatpush.msra.mxu0 %v733
        %1764 = vmatpush.msra.mxu0 %v732
        %1765 = vmatpush.msra.mxu0 %v731
        %1766 = vmatpush.msra.mxu0 %v730
        %1767 = vmatmul.f32.gmra.mxu0 %v1116
        %v1768 = vpop.f32.mrf.mxu0
        %v1769 = vadd.f32 %v1749, %v1768
        %1770 = vdwg.mxu0
        %1771 = vmatpush.msra.mxu0 %v761
        %1772 = vmatpush.msra.mxu0 %v760
        %1773 = vmatpush.msra.mxu0 %v759
        %1774 = vmatpush.msra.mxu0 %v758
        %1775 = vmatpush.msra.mxu0 %v757
        %1776 = vmatpush.msra.mxu0 %v756
        %1777 = vmatpush.msra.mxu0 %v755
        %1778 = vmatpush.msra.mxu0 %v754
        %1779 = vmatpush.msra.mxu0 %v753
        %1780 = vmatpush.msra.mxu0 %v752
        %1781 = vmatpush.msra.mxu0 %v751
        %1782 = vmatpush.msra.mxu0 %v750
        %1783 = vmatpush.msra.mxu0 %v749
        %1784 = vmatpush.msra.mxu0 %v748
        %1785 = vmatpush.msra.mxu0 %v747
        %1786 = vmatpush.msra.mxu0 %v746
        %1787 = vmatmul.f32.gmra.mxu0 %v1117
        %v1788 = vpop.f32.mrf.mxu0
        %v1789 = vadd.f32 %v1769, %v1788
        %1790 = vdwg.mxu0
        %1791 = vmatpush.msra.mxu0 %v777
        %1792 = vmatpush.msra.mxu0 %v776
        %1793 = vmatpush.msra.mxu0 %v775
        %1794 = vmatpush.msra.mxu0 %v774
        %1795 = vmatpush.msra.mxu0 %v773
        %1796 = vmatpush.msra.mxu0 %v772
        %1797 = vmatpush.msra.mxu0 %v771
        %1798 = vmatpush.msra.mxu0 %v770
        %1799 = vmatpush.msra.mxu0 %v769
        %1800 = vmatpush.msra.mxu0 %v768
        %1801 = vmatpush.msra.mxu0 %v767
        %1802 = vmatpush.msra.mxu0 %v766
        %1803 = vmatpush.msra.mxu0 %v765
        %1804 = vmatpush.msra.mxu0 %v764
        %1805 = vmatpush.msra.mxu0 %v763
        %1806 = vmatpush.msra.mxu0 %v762
        %1807 = vmatmul.f32.gmra.mxu0 %v1118
        %v1808 = vpop.f32.mrf.mxu0
        %v1809 = vadd.f32 %v1789, %v1808
        %1810 = vdwg.mxu0
        %1811 = vmatpush.msra.mxu0 %v793
        %1812 = vmatpush.msra.mxu0 %v792
        %1813 = vmatpush.msra.mxu0 %v791
        %1814 = vmatpush.msra.mxu0 %v790
        %1815 = vmatpush.msra.mxu0 %v789
        %1816 = vmatpush.msra.mxu0 %v788
        %1817 = vmatpush.msra.mxu0 %v787
        %1818 = vmatpush.msra.mxu0 %v786
        %1819 = vmatpush.msra.mxu0 %v785
        %1820 = vmatpush.msra.mxu0 %v784
        %1821 = vmatpush.msra.mxu0 %v783
        %1822 = vmatpush.msra.mxu0 %v782
        %1823 = vmatpush.msra.mxu0 %v781
        %1824 = vmatpush.msra.mxu0 %v780
        %1825 = vmatpush.msra.mxu0 %v779
        %1826 = vmatpush.msra.mxu0 %v778
        %1827 = vmatmul.f32.gmra.mxu0 %v1119
        %v1828 = vpop.f32.mrf.mxu0
        %v1829 = vadd.f32 %v1809, %v1828
        %1830 = vdwg.mxu0
        %1831 = vmatpush.msra.mxu0 %v809
        %1832 = vmatpush.msra.mxu0 %v808
        %1833 = vmatpush.msra.mxu0 %v807
        %1834 = vmatpush.msra.mxu0 %v806
        %1835 = vmatpush.msra.mxu0 %v805
        %1836 = vmatpush.msra.mxu0 %v804
        %1837 = vmatpush.msra.mxu0 %v803
        %1838 = vmatpush.msra.mxu0 %v802
        %1839 = vmatpush.msra.mxu0 %v801
        %1840 = vmatpush.msra.mxu0 %v800
        %1841 = vmatpush.msra.mxu0 %v799
        %1842 = vmatpush.msra.mxu0 %v798
        %1843 = vmatpush.msra.mxu0 %v797
        %1844 = vmatpush.msra.mxu0 %v796
        %1845 = vmatpush.msra.mxu0 %v795
        %1846 = vmatpush.msra.mxu0 %v794
        %1847 = vmatmul.f32.gmra.mxu0 %v1122
        %v1848 = vpop.f32.mrf.mxu0
        %v1849 = vadd.f32 %v1829, %v1848
        %1850 = vdwg.mxu0
        %1851 = vmatpush.msra.mxu0 %v825
        %1852 = vmatpush.msra.mxu0 %v824
        %1853 = vmatpush.msra.mxu0 %v823
        %1854 = vmatpush.msra.mxu0 %v822
        %1855 = vmatpush.msra.mxu0 %v821
        %1856 = vmatpush.msra.mxu0 %v820
        %1857 = vmatpush.msra.mxu0 %v819
        %1858 = vmatpush.msra.mxu0 %v818
        %1859 = vmatpush.msra.mxu0 %v817
        %1860 = vmatpush.msra.mxu0 %v816
        %1861 = vmatpush.msra.mxu0 %v815
        %1862 = vmatpush.msra.mxu0 %v814
        %1863 = vmatpush.msra.mxu0 %v813
        %1864 = vmatpush.msra.mxu0 %v812
        %1865 = vmatpush.msra.mxu0 %v811
        %1866 = vmatpush.msra.mxu0 %v810
        %1867 = vmatmul.f32.gmra.mxu0 %v1123
        %v1868 = vpop.f32.mrf.mxu0
        %v1869 = vadd.f32 %v1849, %v1868
        %1870 = vdwg.mxu0
        %1871 = vmatpush.msra.mxu0 %v841
        %1872 = vmatpush.msra.mxu0 %v840
        %1873 = vmatpush.msra.mxu0 %v839
        %1874 = vmatpush.msra.mxu0 %v838
        %1875 = vmatpush.msra.mxu0 %v837
        %1876 = vmatpush.msra.mxu0 %v836
        %1877 = vmatpush.msra.mxu0 %v835
        %1878 = vmatpush.msra.mxu0 %v834
        %1879 = vmatpush.msra.mxu0 %v833
        %1880 = vmatpush.msra.mxu0 %v832
        %1881 = vmatpush.msra.mxu0 %v831
        %1882 = vmatpush.msra.mxu0 %v830
        %1883 = vmatpush.msra.mxu0 %v829
        %1884 = vmatpush.msra.mxu0 %v828
        %1885 = vmatpush.msra.mxu0 %v827
        %1886 = vmatpush.msra.mxu0 %v826
        %1887 = vmatmul.f32.gmra.mxu0 %v1124
        %v1888 = vpop.f32.mrf.mxu0
        %v1889 = vadd.f32 %v1869, %v1888
        %1890 = vdwg.mxu0
        %1891 = vmatpush.msra.mxu0 %v857
        %1892 = vmatpush.msra.mxu0 %v856
        %1893 = vmatpush.msra.mxu0 %v855
        %1894 = vmatpush.msra.mxu0 %v854
        %1895 = vmatpush.msra.mxu0 %v853
        %1896 = vmatpush.msra.mxu0 %v852
        %1897 = vmatpush.msra.mxu0 %v851
        %1898 = vmatpush.msra.mxu0 %v850
        %1899 = vmatpush.msra.mxu0 %v849
        %1900 = vmatpush.msra.mxu0 %v848
        %1901 = vmatpush.msra.mxu0 %v847
        %1902 = vmatpush.msra.mxu0 %v846
        %1903 = vmatpush.msra.mxu0 %v845
        %1904 = vmatpush.msra.mxu0 %v844
        %1905 = vmatpush.msra.mxu0 %v843
        %1906 = vmatpush.msra.mxu0 %v842
        %1907 = vmatmul.f32.gmra.mxu0 %v1125
        %v1908 = vpop.f32.mrf.mxu0
        %v1909 = vadd.f32 %v1889, %v1908
        %1910 = vdwg.mxu0
        %1911 = vmatpush.msra.mxu0 %v873
        %1912 = vmatpush.msra.mxu0 %v872
        %1913 = vmatpush.msra.mxu0 %v871
        %1914 = vmatpush.msra.mxu0 %v870
        %1915 = vmatpush.msra.mxu0 %v869
        %1916 = vmatpush.msra.mxu0 %v868
        %1917 = vmatpush.msra.mxu0 %v867
        %1918 = vmatpush.msra.mxu0 %v866
        %1919 = vmatpush.msra.mxu0 %v865
        %1920 = vmatpush.msra.mxu0 %v864
        %1921 = vmatpush.msra.mxu0 %v863
        %1922 = vmatpush.msra.mxu0 %v862
        %1923 = vmatpush.msra.mxu0 %v861
        %1924 = vmatpush.msra.mxu0 %v860
        %1925 = vmatpush.msra.mxu0 %v859
        %1926 = vmatpush.msra.mxu0 %v858
        %1927 = vmatmul.f32.gmra.mxu0 %v1126
        %v1928 = vpop.f32.mrf.mxu0
        %v1929 = vadd.f32 %v1909, %v1928
        %1930 = vdwg.mxu0
        %1931 = vmatpush.msra.mxu0 %v889
        %1932 = vmatpush.msra.mxu0 %v888
        %1933 = vmatpush.msra.mxu0 %v887
        %1934 = vmatpush.msra.mxu0 %v886
        %1935 = vmatpush.msra.mxu0 %v885
        %1936 = vmatpush.msra.mxu0 %v884
        %1937 = vmatpush.msra.mxu0 %v883
        %1938 = vmatpush.msra.mxu0 %v882
        %1939 = vmatpush.msra.mxu0 %v881
        %1940 = vmatpush.msra.mxu0 %v880
        %1941 = vmatpush.msra.mxu0 %v879
        %1942 = vmatpush.msra.mxu0 %v878
        %1943 = vmatpush.msra.mxu0 %v877
        %1944 = vmatpush.msra.mxu0 %v876
        %1945 = vmatpush.msra.mxu0 %v875
        %1946 = vmatpush.msra.mxu0 %v874
        %1947 = vmatmul.f32.gmra.mxu0 %v1127
        %v1948 = vpop.f32.mrf.mxu0
        %v1949 = vadd.f32 %v1929, %v1948
        %1950 = vdwg.mxu0
        %1951 = vmatpush.msra.mxu0 %v905
        %1952 = vmatpush.msra.mxu0 %v904
        %1953 = vmatpush.msra.mxu0 %v903
        %1954 = vmatpush.msra.mxu0 %v902
        %1955 = vmatpush.msra.mxu0 %v901
        %1956 = vmatpush.msra.mxu0 %v900
        %1957 = vmatpush.msra.mxu0 %v899
        %1958 = vmatpush.msra.mxu0 %v898
        %1959 = vmatpush.msra.mxu0 %v897
        %1960 = vmatpush.msra.mxu0 %v896
        %1961 = vmatpush.msra.mxu0 %v895
        %1962 = vmatpush.msra.mxu0 %v894
        %1963 = vmatpush.msra.mxu0 %v893
        %1964 = vmatpush.msra.mxu0 %v892
        %1965 = vmatpush.msra.mxu0 %v891
        %1966 = vmatpush.msra.mxu0 %v890
        %1967 = vmatmul.f32.gmra.mxu0 %v1128
        %v1968 = vpop.f32.mrf.mxu0
        %v1969 = vadd.f32 %v1949, %v1968
        %1970 = vdwg.mxu0
        %1971 = vmatpush.msra.mxu0 %v921
        %1972 = vmatpush.msra.mxu0 %v920
        %1973 = vmatpush.msra.mxu0 %v919
        %1974 = vmatpush.msra.mxu0 %v918
        %1975 = vmatpush.msra.mxu0 %v917
        %1976 = vmatpush.msra.mxu0 %v916
        %1977 = vmatpush.msra.mxu0 %v915
        %1978 = vmatpush.msra.mxu0 %v914
        %1979 = vmatpush.msra.mxu0 %v913
        %1980 = vmatpush.msra.mxu0 %v912
        %1981 = vmatpush.msra.mxu0 %v911
        %1982 = vmatpush.msra.mxu0 %v910
        %1983 = vmatpush.msra.mxu0 %v909
        %1984 = vmatpush.msra.mxu0 %v908
        %1985 = vmatpush.msra.mxu0 %v907
        %1986 = vmatpush.msra.mxu0 %v906
        %1987 = vmatmul.f32.gmra.mxu0 %v1129
        %v1988 = vpop.f32.mrf.mxu0
        %v1989 = vadd.f32 %v1969, %v1988
        %1990 = vdwg.mxu0
        %1991 = vmatpush.msra.mxu0 %v937
        %1992 = vmatpush.msra.mxu0 %v936
        %1993 = vmatpush.msra.mxu0 %v935
        %1994 = vmatpush.msra.mxu0 %v934
        %1995 = vmatpush.msra.mxu0 %v933
        %1996 = vmatpush.msra.mxu0 %v932
        %1997 = vmatpush.msra.mxu0 %v931
        %1998 = vmatpush.msra.mxu0 %v930
        %1999 = vmatpush.msra.mxu0 %v929
        %2000 = vmatpush.msra.mxu0 %v928
        %2001 = vmatpush.msra.mxu0 %v927
        %2002 = vmatpush.msra.mxu0 %v926
        %2003 = vmatpush.msra.mxu0 %v925
        %2004 = vmatpush.msra.mxu0 %v924
        %2005 = vmatpush.msra.mxu0 %v923
        %2006 = vmatpush.msra.mxu0 %v922
        %2007 = vmatmul.f32.gmra.mxu0 %v1132
        %v2008 = vpop.f32.mrf.mxu0
        %v2009 = vadd.f32 %v1989, %v2008
        %2010 = vdwg.mxu0
        %2011 = vmatpush.msra.mxu0 %v953
        %2012 = vmatpush.msra.mxu0 %v952
        %2013 = vmatpush.msra.mxu0 %v951
        %2014 = vmatpush.msra.mxu0 %v950
        %2015 = vmatpush.msra.mxu0 %v949
        %2016 = vmatpush.msra.mxu0 %v948
        %2017 = vmatpush.msra.mxu0 %v947
        %2018 = vmatpush.msra.mxu0 %v946
        %2019 = vmatpush.msra.mxu0 %v945
        %2020 = vmatpush.msra.mxu0 %v944
        %2021 = vmatpush.msra.mxu0 %v943
        %2022 = vmatpush.msra.mxu0 %v942
        %2023 = vmatpush.msra.mxu0 %v941
        %2024 = vmatpush.msra.mxu0 %v940
        %2025 = vmatpush.msra.mxu0 %v939
        %2026 = vmatpush.msra.mxu0 %v938
        %2027 = vmatmul.f32.gmra.mxu0 %v1133
        %v2028 = vpop.f32.mrf.mxu0
        %v2029 = vadd.f32 %v2009, %v2028
        %2030 = vdwg.mxu0
        %2031 = vmatpush.msra.mxu0 %v969
        %2032 = vmatpush.msra.mxu0 %v968
        %2033 = vmatpush.msra.mxu0 %v967
        %2034 = vmatpush.msra.mxu0 %v966
        %2035 = vmatpush.msra.mxu0 %v965
        %2036 = vmatpush.msra.mxu0 %v964
        %2037 = vmatpush.msra.mxu0 %v963
        %2038 = vmatpush.msra.mxu0 %v962
        %2039 = vmatpush.msra.mxu0 %v961
        %2040 = vmatpush.msra.mxu0 %v960
        %2041 = vmatpush.msra.mxu0 %v959
        %2042 = vmatpush.msra.mxu0 %v958
        %2043 = vmatpush.msra.mxu0 %v957
        %2044 = vmatpush.msra.mxu0 %v956
        %2045 = vmatpush.msra.mxu0 %v955
        %2046 = vmatpush.msra.mxu0 %v954
        %2047 = vmatmul.f32.gmra.mxu0 %v1134
        %v2048 = vpop.f32.mrf.mxu0
        %v2049 = vadd.f32 %v2029, %v2048
        %2050 = vdwg.mxu0
        %2051 = vmatpush.msra.mxu0 %v985
        %2052 = vmatpush.msra.mxu0 %v984
        %2053 = vmatpush.msra.mxu0 %v983
        %2054 = vmatpush.msra.mxu0 %v982
        %2055 = vmatpush.msra.mxu0 %v981
        %2056 = vmatpush.msra.mxu0 %v980
        %2057 = vmatpush.msra.mxu0 %v979
        %2058 = vmatpush.msra.mxu0 %v978
        %2059 = vmatpush.msra.mxu0 %v977
        %2060 = vmatpush.msra.mxu0 %v976
        %2061 = vmatpush.msra.mxu0 %v975
        %2062 = vmatpush.msra.mxu0 %v974
        %2063 = vmatpush.msra.mxu0 %v973
        %2064 = vmatpush.msra.mxu0 %v972
        %2065 = vmatpush.msra.mxu0 %v971
        %2066 = vmatpush.msra.mxu0 %v970
        %2067 = vmatmul.f32.gmra.mxu0 %v1135
        %v2068 = vpop.f32.mrf.mxu0
        %v2069 = vadd.f32 %v2049, %v2068
        %2070 = vdwg.mxu0
        %2071 = vmatpush.msra.mxu0 %v1001
        %2072 = vmatpush.msra.mxu0 %v1000
        %2073 = vmatpush.msra.mxu0 %v999
        %2074 = vmatpush.msra.mxu0 %v998
        %2075 = vmatpush.msra.mxu0 %v997
        %2076 = vmatpush.msra.mxu0 %v996
        %2077 = vmatpush.msra.mxu0 %v995
        %2078 = vmatpush.msra.mxu0 %v994
        %2079 = vmatpush.msra.mxu0 %v993
        %2080 = vmatpush.msra.mxu0 %v992
        %2081 = vmatpush.msra.mxu0 %v991
        %2082 = vmatpush.msra.mxu0 %v990
        %2083 = vmatpush.msra.mxu0 %v989
        %2084 = vmatpush.msra.mxu0 %v988
        %2085 = vmatpush.msra.mxu0 %v987
        %2086 = vmatpush.msra.mxu0 %v986
        %2087 = vmatmul.f32.gmra.mxu0 %v1136
        %v2088 = vpop.f32.mrf.mxu0
        %v2089 = vadd.f32 %v2069, %v2088
        %2090 = vdwg.mxu0
        %2091 = vmatpush.msra.mxu0 %v1017
        %2092 = vmatpush.msra.mxu0 %v1016
        %2093 = vmatpush.msra.mxu0 %v1015
        %2094 = vmatpush.msra.mxu0 %v1014
        %2095 = vmatpush.msra.mxu0 %v1013
        %2096 = vmatpush.msra.mxu0 %v1012
        %2097 = vmatpush.msra.mxu0 %v1011
        %2098 = vmatpush.msra.mxu0 %v1010
        %2099 = vmatpush.msra.mxu0 %v1009
        %2100 = vmatpush.msra.mxu0 %v1008
        %2101 = vmatpush.msra.mxu0 %v1007
        %2102 = vmatpush.msra.mxu0 %v1006
        %2103 = vmatpush.msra.mxu0 %v1005
        %2104 = vmatpush.msra.mxu0 %v1004
        %2105 = vmatpush.msra.mxu0 %v1003
        %2106 = vmatpush.msra.mxu0 %v1002
        %2107 = vmatmul.f32.gmra.mxu0 %v1137
        %v2108 = vpop.f32.mrf.mxu0
        %v2109 = vadd.f32 %v2089, %v2108
        %2110 = vdwg.mxu0
        %2111 = vmatpush.msra.mxu0 %v1033
        %2112 = vmatpush.msra.mxu0 %v1032
        %2113 = vmatpush.msra.mxu0 %v1031
        %2114 = vmatpush.msra.mxu0 %v1030
        %2115 = vmatpush.msra.mxu0 %v1029
        %2116 = vmatpush.msra.mxu0 %v1028
        %2117 = vmatpush.msra.mxu0 %v1027
        %2118 = vmatpush.msra.mxu0 %v1026
        %2119 = vmatpush.msra.mxu0 %v1025
        %2120 = vmatpush.msra.mxu0 %v1024
        %2121 = vmatpush.msra.mxu0 %v1023
        %2122 = vmatpush.msra.mxu0 %v1022
        %2123 = vmatpush.msra.mxu0 %v1021
        %2124 = vmatpush.msra.mxu0 %v1020
        %2125 = vmatpush.msra.mxu0 %v1019
        %2126 = vmatpush.msra.mxu0 %v1018
        %2127 = vmatmul.f32.gmra.mxu0 %v1138
        %v2128 = vpop.f32.mrf.mxu0
        %v2129 = vadd.f32 %v2109, %v2128
        %2130 = vdwg.mxu0
        %2131 = vmatpush.msra.mxu0 %v1049
        %2132 = vmatpush.msra.mxu0 %v1048
        %2133 = vmatpush.msra.mxu0 %v1047
        %2134 = vmatpush.msra.mxu0 %v1046
        %2135 = vmatpush.msra.mxu0 %v1045
        %2136 = vmatpush.msra.mxu0 %v1044
        %2137 = vmatpush.msra.mxu0 %v1043
        %2138 = vmatpush.msra.mxu0 %v1042
        %2139 = vmatpush.msra.mxu0 %v1041
        %2140 = vmatpush.msra.mxu0 %v1040
        %2141 = vmatpush.msra.mxu0 %v1039
        %2142 = vmatpush.msra.mxu0 %v1038
        %2143 = vmatpush.msra.mxu0 %v1037
        %2144 = vmatpush.msra.mxu0 %v1036
        %2145 = vmatpush.msra.mxu0 %v1035
        %2146 = vmatpush.msra.mxu0 %v1034
        %2147 = vmatmul.f32.gmra.mxu0 %v1139
        %v2148 = vpop.f32.mrf.mxu0
        %v2149 = vadd.f32 %v2129, %v2148
        %2150 = vdwg.mxu0
        %2151 = vmatpush.msra.mxu0 %v1065
        %2152 = vmatpush.msra.mxu0 %v1064
        %2153 = vmatpush.msra.mxu0 %v1063
        %2154 = vmatpush.msra.mxu0 %v1062
        %2155 = vmatpush.msra.mxu0 %v1061
        %2156 = vmatpush.msra.mxu0 %v1060
        %2157 = vmatpush.msra.mxu0 %v1059
        %2158 = vmatpush.msra.mxu0 %v1058
        %2159 = vmatpush.msra.mxu0 %v1057
        %2160 = vmatpush.msra.mxu0 %v1056
        %2161 = vmatpush.msra.mxu0 %v1055
        %2162 = vmatpush.msra.mxu0 %v1054
        %2163 = vmatpush.msra.mxu0 %v1053
        %2164 = vmatpush.msra.mxu0 %v1052
        %2165 = vmatpush.msra.mxu0 %v1051
        %2166 = vmatpush.msra.mxu0 %v1050
        %2167 = vmatmul.f32.gmra.mxu0 %v1141
        %v2168 = vpop.f32.mrf.mxu0
        %v2169 = vadd.f32 %v2149, %v2168
        %2170 = vdwg.mxu0
        %v2171 = vadd.f32 %v281, %v2169
        %2172 = vst [vmem:[#allocation8] sm:$0x3] %v2171
        %p2173 = scmp.eq.s32.totalorder %s26, 15
        %p2174 = scmp.eq.s32.totalorder %s25, 0
        %p2175 = pnand %p2173, %p2174
        %p2176 = pneg %p2175
        // Predicated region
        $region49: #{tpu_custom_call.1} parent=31 // pred_check
          _
        $region50: #{tpu_custom_call.1} parent=31 // pred_check_branch
          %2178 = sbr.rel (%p2175) target = $region52
        $region51: #{tpu_custom_call.1} parent=31 // pred_region
          %v2179 = vld [vmem:[#allocation8] sm:$0x3]
          %v2180 = vld [vmem:[#allocation7] sm:$0x1]
          %v2182 = vperm.slane %v2180, 0
          %v2184 = vadd.f32 %v2179, %v2182
          %2185 = vst [vmem:[#allocation8] sm:$0x3] %v2184
        $region52: #{tpu_custom_call.1} parent=31 // pred_fallthru
          _
        // Predicated region
        $region53: #{tpu_custom_call.1} parent=31 // pred_check
          %p2186 = pneg %p127
        $region54: #{tpu_custom_call.1} parent=31 // pred_check_branch
          %2188 = sbr.rel (%p2186) target = $region56
        $region55: #{tpu_custom_call.1} parent=31 // pred_region
          %2190 = vsyncadd [#allocation4], 0
          %s2192 = sshll.u32 [#allocation8], 4
          %s2193 = int_to_ptr.vmem [resolvable:$true] %s2192
          %s2194 = sshll.u32 %s3, 4
          %s2195 = int_to_ptr.hbm [resolvable:$true] %s2194
          %2197 = dma.vmem_to_hbm [thread:$0]  %s2193, 32, %s2195, [#allocation4]
        $region56: #{tpu_custom_call.1} parent=31 // pred_fallthru
          _
        // Predicated region
        $region57: #{tpu_custom_call.1} parent=31 // pred_check
          %p2198 = pneg %p127
        $region58: #{tpu_custom_call.1} parent=31 // pred_check_branch
          %2200 = sbr.rel (%p2198) target = $region60
        $region59: #{tpu_custom_call.1} parent=31 // pred_region
          %2202 = dma.done [#allocation4], 32
        $region60: #{tpu_custom_call.1} parent=31 // pred_fallthru
          _
      $region32: #{tpu_custom_call.1} parent=5 // pred_fallthru
        _
      %p2203 = scmp.le.s32.totalorder 2, %s16
      // Predicated region
      $region61: #{tpu_custom_call.1} parent=5 // pred_check
        %p2204 = pneg %p2203
      $region62: #{tpu_custom_call.1} parent=5 // pred_check_branch
        %2206 = sbr.rel (%p2204) target = $region64
      $region63: #{tpu_custom_call.1} parent=5 // pred_region
        %s2207 = ssub.s32 %s16, 2
      $region64: #{tpu_custom_call.1} parent=5 // pred_fallthru
        _
    $region6: #{tpu_custom_call.1} parent=1 // loop_footer
      %s20 = sadd.s32 1, %s16
    $region7: #{tpu_custom_call.1} parent=1 // loop_footer_branch
      %15 = sbr.rel target = $region3
    $region8: #{tpu_custom_call.1} parent=1 // loop_exit
      _
    %2208 = vsyncpa [#allocation3], 1
    %s2209 = scalar_lea.sflag [#allocation3], 1
    %2210 = vsyncpa %s2209, 1
    %2211 = vsyncpa [#allocation6], 1
    %s2212 = scalar_lea.sflag [#allocation6], 1
    %2213 = vsyncpa %s2212, 1
    %2214 = vsyncpa [#allocation4], 1
    %s2215 = scalar_lea.sflag [#allocation4], 1
    %2216 = vsyncpa %s2215, 1

</llo_original>
